<compile_context>
chip_gen: v7x
topology: tpu7x:2x2x1
jax: 0.10.0
libtpu: 0.0.40
codegen_flags: <defaults>
</compile_context>

<pallas_src>
import functools

import jax
import jax.numpy as jnp
import numpy as np
from jax.experimental import pallas as pl
from jax.experimental.pallas import tpu as pltpu


# ---------------------------------------------------------------------------
# Fused Pallas kernel: conv_1x1 -> L dilated residual layers -> conv_out+ReLU
# Processes one batch element per grid step; everything stays in VMEM.
# ---------------------------------------------------------------------------
def _single_stage_kernel(x_ref, win_ref, bin_ref, wd_ref, bd_ref, w1_ref,
                         b1_ref, wo_ref, bo_ref, out_ref, hpad_ref):
    F, Tpad = hpad_ref.shape
    T = x_ref.shape[2]
    D = (Tpad - T) // 2            # max padding (>= largest dilation, >= 1)
    L = wd_ref.shape[0]

    # Zero the padded scratch; only the center [D:D+T] is ever overwritten, so
    # the halo regions provide the conv zero-padding for every layer.
    hpad_ref[...] = jnp.zeros_like(hpad_ref)

    x = x_ref[0]                                                   # (dim, T)

    # conv_1x1: (F, dim) @ (dim, T)
    h = jnp.dot(win_ref[...], x,
                preferred_element_type=jnp.float32) + bin_ref[...]  # (F, T)

    # Dilated residual layers (static Python loop -> fully unrolled)
    for i in range(L):
        d = 2 ** i
        hpad_ref[:, D:D + T] = h
        h_m = hpad_ref[:, D - d:D - d + T]        # h[:, t - d]  (zero padded)
        h_p = hpad_ref[:, D + d:D + d + T]        # h[:, t + d]  (zero padded)
        h_stack = jnp.concatenate([h_m, h, h_p], axis=0)           # (3F, T)

        # conv_dilated (3 taps packed into one matmul) + ReLU
        y = jnp.dot(wd_ref[i], h_stack,
                    preferred_element_type=jnp.float32) + bd_ref[i]
        y = jnp.maximum(y, 0.0)

        # conv_1x1
        y = jnp.dot(w1_ref[i], y,
                    preferred_element_type=jnp.float32) + b1_ref[i]

        # Dropout == identity (inference).
        h = h + y                                                  # residual

    # conv_out: kernel=3, stride=2, padding=1, then ReLU
    hpad_ref[:, D:D + T] = h
    h_m = hpad_ref[:, D - 1:D - 1 + T]
    h_p = hpad_ref[:, D + 1:D + 1 + T]
    h_stack = jnp.concatenate([h_m, h, h_p], axis=0)               # (3F, T)
    y = jnp.dot(wo_ref[...], h_stack,
                preferred_element_type=jnp.float32) + bo_ref[...]  # (C, T)
    y = jnp.maximum(y, 0.0)

    # Stride-2 subsample via selection matrix (stays on the MXU, no HBM pass).
    T_out = out_ref.shape[2]
    row = jax.lax.broadcasted_iota(jnp.int32, (T, T_out), 0)
    col = jax.lax.broadcasted_iota(jnp.int32, (T, T_out), 1)
    sel = (row == 2 * col).astype(jnp.float32)                     # (T, T_out)
    out_ref[0] = jnp.dot(y, sel,
                         preferred_element_type=jnp.float32).astype(out_ref.dtype)


# ---------------------------------------------------------------------------
# Wrapper: pack PyTorch-layout weights and launch the fused kernel.
# ---------------------------------------------------------------------------
def _pack_params(params):
    layers = params["layers"]
    w_in = params["w_in"][:, :, 0]                     # (F, dim)
    b_in = params["b_in"][:, None]                     # (F, 1)
    wd = jnp.stack(
        [jnp.concatenate([l["w_d"][:, :, k] for k in range(3)], axis=1)
         for l in layers], axis=0)                     # (L, F, 3F)
    bd = jnp.stack([l["b_d"] for l in layers], 0)[:, :, None]      # (L, F, 1)
    w1 = jnp.stack([l["w_1"][:, :, 0] for l in layers], 0)         # (L, F, F)
    b1 = jnp.stack([l["b_1"] for l in layers], 0)[:, :, None]      # (L, F, 1)
    wo = jnp.concatenate([params["w_out"][:, :, k] for k in range(3)], axis=1)
    bo = params["b_out"][:, None]                      # (C, 1)
    return w_in, b_in, wd, bd, w1, b1, wo, bo


@jax.jit
def single_stage_forward(x, params):
    """x: (N, dim, T) -> (N, num_classes, (T-1)//2 + 1), matching PyTorch."""
    N, dim, T = x.shape
    w_in, b_in, wd, bd, w1, b1, wo, bo = _pack_params(params)
    L, F, _ = wd.shape
    C = wo.shape[0]
    D = max(1, 2 ** (L - 1))                  # max dilation (and conv_out pad)
    T_out = (T - 1) // 2 + 1

    out = pl.pallas_call(
        _single_stage_kernel,
        out_shape=jax.ShapeDtypeStruct((N, C, T_out), jnp.float32),
        grid=(N,),
        in_specs=[
            pl.BlockSpec((1, dim, T), lambda n: (n, 0, 0)),   # x (per-batch)
            pl.BlockSpec((F, dim), lambda n: (0, 0)),         # W_in     (resident)
            pl.BlockSpec((F, 1), lambda n: (0, 0)),           # b_in
            pl.BlockSpec((L, F, 3 * F), lambda n: (0, 0, 0)),  # Wd packed
            pl.BlockSpec((L, F, 1), lambda n: (0, 0, 0)),      # bd
            pl.BlockSpec((L, F, F), lambda n: (0, 0, 0)),      # W1
            pl.BlockSpec((L, F, 1), lambda n: (0, 0, 0)),      # b1
            pl.BlockSpec((C, 3 * F), lambda n: (0, 0)),        # Wo packed
            pl.BlockSpec((C, 1), lambda n: (0, 0)),            # bo
        ],
        out_specs=pl.BlockSpec((1, C, T_out), lambda n: (n, 0, 0)),
        scratch_shapes=[pltpu.VMEM((F, T + 2 * D), jnp.float32)],
        compiler_params=pltpu.CompilerParams(
            dimension_semantics=("parallel",)),               # megacore on v7x
    )(x, w_in, b_in, wd, bd, w1, b1, wo, bo)
    return out


# ---------------------------------------------------------------------------
# Pure-JAX reference (lax.conv_general_dilated) for verification
# ---------------------------------------------------------------------------
def _conv1d_ref(x, w, b, stride=1, padding=0, dilation=1):
    y = jax.lax.conv_general_dilated(
        x, w,
        window_strides=(stride,),
        padding=[(padding, padding)],
        rhs_dilation=(dilation,),
        dimension_numbers=("NCH", "OIH", "NCH"),
        precision=jax.lax.Precision.HIGHEST,
    )
    return y + b[None, :, None]


def single_stage_forward_ref(x, params):
    h = _conv1d_ref(x, params["w_in"], params["b_in"])
    for i, lyr in enumerate(params["layers"]):
        d = 2 ** i
        y = jax.nn.relu(_conv1d_ref(h, lyr["w_d"], lyr["b_d"],
                                    padding=d, dilation=d))
        y = _conv1d_ref(y, lyr["w_1"], lyr["b_1"])
        h = h + y                                # dropout == identity (eval)
    return jax.nn.relu(_conv1d_ref(h, params["w_out"], params["b_out"],
                                   stride=2, padding=1))


# ---------------------------------------------------------------------------
# PyTorch-style parameter init: U(-k, k), k = 1/sqrt(in_channels * kernel)
# ---------------------------------------------------------------------------
def _conv_init(key, out_ch, in_ch, ksize):
    k1, k2 = jax.random.split(key)
    bound = 1.0 / np.sqrt(in_ch * ksize)
    w = jax.random.uniform(k1, (out_ch, in_ch, ksize), jnp.float32, -bound, bound)
    b = jax.random.uniform(k2, (out_ch,), jnp.float32, -bound, bound)
    return w, b


def init_params(key, num_layers, num_f_maps, dim, num_classes):
    keys = jax.random.split(key, num_layers * 2 + 2)
    w_in, b_in = _conv_init(keys[0], num_f_maps, dim, 1)
    layers = []
    for i in range(num_layers):
        w_d, b_d = _conv_init(keys[1 + 2 * i], num_f_maps, num_f_maps, 3)
        w_1, b_1 = _conv_init(keys[2 + 2 * i], num_f_maps, num_f_maps, 1)
        layers.append({"w_d": w_d, "b_d": b_d, "w_1": w_1, "b_1": b_1})
    w_out, b_out = _conv_init(keys[-1], num_classes, num_f_maps, 3)
    return {"w_in": w_in, "b_in": b_in, "layers": layers,
            "w_out": w_out, "b_out": b_out}


if __name__ == "__main__":
    # SingleStageModel(num_layers=4, num_f_maps=32, dim=16, num_classes=8)
    N, dim, T = 2, 16, 16
    num_layers, num_f_maps, num_classes = 4, 32, 8

    key = jax.random.PRNGKey(0)
    kx, kp = jax.random.split(key)
    x = jax.random.normal(kx, (N, dim, T), jnp.float32)
    params = init_params(kp, num_layers, num_f_maps, dim, num_classes)

    out = single_stage_forward(x, params)
    jax.block_until_ready(out)

    T_out = (T - 1) // 2 + 1
    assert out.shape == (N, num_classes, T_out), out.shape

    ref = single_stage_forward_ref(x, params)
    np.testing.assert_allclose(np.asarray(out), np.asarray(ref),
                               rtol=2e-2, atol=2e-2)

    print("KERNEL_OK")
</pallas_src>

<mosaic_0001>
module attributes {stable_mosaic.version = 11 : i64} {
  func.func @_single_stage_kernel(%arg0: i32, %arg1: memref<1x16x16xf32, #tpu.memory_space<vmem>>, %arg2: memref<32x16xf32, #tpu.memory_space<vmem>>, %arg3: memref<32x1xf32, #tpu.memory_space<vmem>>, %arg4: memref<4x32x96xf32, #tpu.memory_space<vmem>>, %arg5: memref<4x32x1xf32, #tpu.memory_space<vmem>>, %arg6: memref<4x32x32xf32, #tpu.memory_space<vmem>>, %arg7: memref<4x32x1xf32, #tpu.memory_space<vmem>>, %arg8: memref<8x96xf32, #tpu.memory_space<vmem>>, %arg9: memref<8x1xf32, #tpu.memory_space<vmem>>, %arg10: memref<1x8x8xf32, #tpu.memory_space<vmem>>, %arg11: memref<32x32xf32, #tpu.memory_space<vmem>>) attributes {dimension_semantics = [#tpu.dimension_semantics<parallel>], iteration_bounds = array<i64: 2>, scalar_prefetch = 0 : i64, scratch_operands = 1 : i64, tpu.core_type = #tpu.core_type<tc>, window_params = [{transform_indices = @transform_0, window_bounds = array<i64: 1, 16, 16>}, {pipeline_mode = #tpu.pipeline_mode<synchronous>, transform_indices = @transform_1, window_bounds = array<i64: 32, 16>}, {pipeline_mode = #tpu.pipeline_mode<synchronous>, transform_indices = @transform_2, window_bounds = array<i64: 32, 1>}, {pipeline_mode = #tpu.pipeline_mode<synchronous>, transform_indices = @transform_3, window_bounds = array<i64: 4, 32, 96>}, {pipeline_mode = #tpu.pipeline_mode<synchronous>, transform_indices = @transform_4, window_bounds = array<i64: 4, 32, 1>}, {pipeline_mode = #tpu.pipeline_mode<synchronous>, transform_indices = @transform_5, window_bounds = array<i64: 4, 32, 32>}, {pipeline_mode = #tpu.pipeline_mode<synchronous>, transform_indices = @transform_6, window_bounds = array<i64: 4, 32, 1>}, {pipeline_mode = #tpu.pipeline_mode<synchronous>, transform_indices = @transform_7, window_bounds = array<i64: 8, 96>}, {pipeline_mode = #tpu.pipeline_mode<synchronous>, transform_indices = @transform_8, window_bounds = array<i64: 8, 1>}, {transform_indices = @transform_9, window_bounds = array<i64: 1, 8, 8>}]} {
    %cst = arith.constant 0.000000e+00 : f32
    %0 = vector.broadcast %cst : f32 to vector<32x32xf32>
    %c0 = arith.constant 0 : index
    %c0_0 = arith.constant 0 : index
    %1 = vector.load %arg11[%c0, %c0_0] : memref<32x32xf32, #tpu.memory_space<vmem>>, vector<32x32xf32>
    tpu.vector_store %arg11[%c0, %c0_0], %0 {strides = array<i32>} : memref<32x32xf32, #tpu.memory_space<vmem>>, vector<32x32xf32>,
    %c0_1 = arith.constant 0 : index
    %c0_2 = arith.constant 0 : index
    %c0_3 = arith.constant 0 : index
    %2 = vector.load %arg1[%c0_1, %c0_2, %c0_3] : memref<1x16x16xf32, #tpu.memory_space<vmem>>, vector<1x16x16xf32>
    %3 = vector.shape_cast %2 : vector<1x16x16xf32> to vector<16x16xf32>
    %c0_4 = arith.constant 0 : index
    %c0_5 = arith.constant 0 : index
    %4 = vector.load %arg2[%c0_4, %c0_5] : memref<32x16xf32, #tpu.memory_space<vmem>>, vector<32x16xf32>
    %cst_6 = arith.constant dense<0.000000e+00> : vector<32x16xf32>
    %5 = tpu.matmul %4, %3, %cst_6 {dimension_numbers = #tpu.dot_dimension_numbers<[1], [0], [0], [1], [0, 0, 1, 1], [], []>} : vector<32x16xf32>, vector<16x16xf32>, vector<32x16xf32> -> vector<32x16xf32>
    %c0_7 = arith.constant 0 : index
    %c0_8 = arith.constant 0 : index
    %6 = vector.load %arg3[%c0_7, %c0_8] : memref<32x1xf32, #tpu.memory_space<vmem>>, vector<32x1xf32>
    %7 = vector.broadcast %6 : vector<32x1xf32> to vector<32x16xf32>
    %8 = arith.addf %5, %7 : vector<32x16xf32>
    %c0_9 = arith.constant 0 : index
    %c8 = arith.constant 8 : index
    %9 = vector.load %arg11[%c0_9, %c8] : memref<32x32xf32, #tpu.memory_space<vmem>>, vector<32x16xf32>
    tpu.vector_store %arg11[%c0_9, %c8], %8 {strides = array<i32>} : memref<32x32xf32, #tpu.memory_space<vmem>>, vector<32x16xf32>,
    %c0_10 = arith.constant 0 : index
    %c7 = arith.constant 7 : index
    %10 = vector.load %arg11[%c0_10, %c7] : memref<32x32xf32, #tpu.memory_space<vmem>>, vector<32x16xf32>
    %c0_11 = arith.constant 0 : index
    %c9 = arith.constant 9 : index
    %11 = vector.load %arg11[%c0_11, %c9] : memref<32x32xf32, #tpu.memory_space<vmem>>, vector<32x16xf32>
    %12 = tpu.concatenate %10, %8, %11 in 0 : vector<32x16xf32>, vector<32x16xf32>, vector<32x16xf32> -> vector<96x16xf32>
    %c0_12 = arith.constant 0 : index
    %c0_13 = arith.constant 0 : index
    %c0_14 = arith.constant 0 : index
    %13 = vector.load %arg4[%c0_12, %c0_13, %c0_14] : memref<4x32x96xf32, #tpu.memory_space<vmem>>, vector<1x32x96xf32>
    %14 = vector.shape_cast %13 : vector<1x32x96xf32> to vector<32x96xf32>
    %cst_15 = arith.constant dense<0.000000e+00> : vector<32x16xf32>
    %15 = tpu.matmul %14, %12, %cst_15 {dimension_numbers = #tpu.dot_dimension_numbers<[1], [0], [0], [1], [0, 0, 1, 1], [], []>} : vector<32x96xf32>, vector<96x16xf32>, vector<32x16xf32> -> vector<32x16xf32>
    %c0_16 = arith.constant 0 : index
    %c0_17 = arith.constant 0 : index
    %c0_18 = arith.constant 0 : index
    %16 = vector.load %arg5[%c0_16, %c0_17, %c0_18] : memref<4x32x1xf32, #tpu.memory_space<vmem>>, vector<1x32x1xf32>
    %17 = vector.shape_cast %16 : vector<1x32x1xf32> to vector<32x1xf32>
    %18 = vector.broadcast %17 : vector<32x1xf32> to vector<32x16xf32>
    %19 = arith.addf %15, %18 : vector<32x16xf32>
    %cst_19 = arith.constant 0.000000e+00 : f32
    %20 = vector.broadcast %cst_19 : f32 to vector<32x16xf32>
    %21 = arith.maximumf %19, %20 : vector<32x16xf32>
    %c0_20 = arith.constant 0 : index
    %c0_21 = arith.constant 0 : index
    %c0_22 = arith.constant 0 : index
    %22 = vector.load %arg6[%c0_20, %c0_21, %c0_22] : memref<4x32x32xf32, #tpu.memory_space<vmem>>, vector<1x32x32xf32>
    %23 = vector.shape_cast %22 : vector<1x32x32xf32> to vector<32x32xf32>
    %cst_23 = arith.constant dense<0.000000e+00> : vector<32x16xf32>
    %24 = tpu.matmul %23, %21, %cst_23 {dimension_numbers = #tpu.dot_dimension_numbers<[1], [0], [0], [1], [0, 0, 1, 1], [], []>} : vector<32x32xf32>, vector<32x16xf32>, vector<32x16xf32> -> vector<32x16xf32>
    %c0_24 = arith.constant 0 : index
    %c0_25 = arith.constant 0 : index
    %c0_26 = arith.constant 0 : index
    %25 = vector.load %arg7[%c0_24, %c0_25, %c0_26] : memref<4x32x1xf32, #tpu.memory_space<vmem>>, vector<1x32x1xf32>
    %26 = vector.shape_cast %25 : vector<1x32x1xf32> to vector<32x1xf32>
    %27 = vector.broadcast %26 : vector<32x1xf32> to vector<32x16xf32>
    %28 = arith.addf %24, %27 : vector<32x16xf32>
    %29 = arith.addf %8, %28 : vector<32x16xf32>
    %c0_27 = arith.constant 0 : index
    %c8_28 = arith.constant 8 : index
    %30 = vector.load %arg11[%c0_27, %c8_28] : memref<32x32xf32, #tpu.memory_space<vmem>>, vector<32x16xf32>
    tpu.vector_store %arg11[%c0_27, %c8_28], %29 {strides = array<i32>} : memref<32x32xf32, #tpu.memory_space<vmem>>, vector<32x16xf32>,
    %c0_29 = arith.constant 0 : index
    %c6 = arith.constant 6 : index
    %31 = vector.load %arg11[%c0_29, %c6] : memref<32x32xf32, #tpu.memory_space<vmem>>, vector<32x16xf32>
    %c0_30 = arith.constant 0 : index
    %c10 = arith.constant 10 : index
    %32 = vector.load %arg11[%c0_30, %c10] : memref<32x32xf32, #tpu.memory_space<vmem>>, vector<32x16xf32>
    %33 = tpu.concatenate %31, %29, %32 in 0 : vector<32x16xf32>, vector<32x16xf32>, vector<32x16xf32> -> vector<96x16xf32>
    %c1 = arith.constant 1 : index
    %c0_31 = arith.constant 0 : index
    %c0_32 = arith.constant 0 : index
    %34 = vector.load %arg4[%c1, %c0_31, %c0_32] : memref<4x32x96xf32, #tpu.memory_space<vmem>>, vector<1x32x96xf32>
    %35 = vector.shape_cast %34 : vector<1x32x96xf32> to vector<32x96xf32>
    %cst_33 = arith.constant dense<0.000000e+00> : vector<32x16xf32>
    %36 = tpu.matmul %35, %33, %cst_33 {dimension_numbers = #tpu.dot_dimension_numbers<[1], [0], [0], [1], [0, 0, 1, 1], [], []>} : vector<32x96xf32>, vector<96x16xf32>, vector<32x16xf32> -> vector<32x16xf32>
    %c1_34 = arith.constant 1 : index
    %c0_35 = arith.constant 0 : index
    %c0_36 = arith.constant 0 : index
    %37 = vector.load %arg5[%c1_34, %c0_35, %c0_36] : memref<4x32x1xf32, #tpu.memory_space<vmem>>, vector<1x32x1xf32>
    %38 = vector.shape_cast %37 : vector<1x32x1xf32> to vector<32x1xf32>
    %39 = vector.broadcast %38 : vector<32x1xf32> to vector<32x16xf32>
    %40 = arith.addf %36, %39 : vector<32x16xf32>
    %cst_37 = arith.constant 0.000000e+00 : f32
    %41 = vector.broadcast %cst_37 : f32 to vector<32x16xf32>
    %42 = arith.maximumf %40, %41 : vector<32x16xf32>
    %c1_38 = arith.constant 1 : index
    %c0_39 = arith.constant 0 : index
    %c0_40 = arith.constant 0 : index
    %43 = vector.load %arg6[%c1_38, %c0_39, %c0_40] : memref<4x32x32xf32, #tpu.memory_space<vmem>>, vector<1x32x32xf32>
    %44 = vector.shape_cast %43 : vector<1x32x32xf32> to vector<32x32xf32>
    %cst_41 = arith.constant dense<0.000000e+00> : vector<32x16xf32>
    %45 = tpu.matmul %44, %42, %cst_41 {dimension_numbers = #tpu.dot_dimension_numbers<[1], [0], [0], [1], [0, 0, 1, 1], [], []>} : vector<32x32xf32>, vector<32x16xf32>, vector<32x16xf32> -> vector<32x16xf32>
    %c1_42 = arith.constant 1 : index
    %c0_43 = arith.constant 0 : index
    %c0_44 = arith.constant 0 : index
    %46 = vector.load %arg7[%c1_42, %c0_43, %c0_44] : memref<4x32x1xf32, #tpu.memory_space<vmem>>, vector<1x32x1xf32>
    %47 = vector.shape_cast %46 : vector<1x32x1xf32> to vector<32x1xf32>
    %48 = vector.broadcast %47 : vector<32x1xf32> to vector<32x16xf32>
    %49 = arith.addf %45, %48 : vector<32x16xf32>
    %50 = arith.addf %29, %49 : vector<32x16xf32>
    %c0_45 = arith.constant 0 : index
    %c8_46 = arith.constant 8 : index
    %51 = vector.load %arg11[%c0_45, %c8_46] : memref<32x32xf32, #tpu.memory_space<vmem>>, vector<32x16xf32>
    tpu.vector_store %arg11[%c0_45, %c8_46], %50 {strides = array<i32>} : memref<32x32xf32, #tpu.memory_space<vmem>>, vector<32x16xf32>,
    %c0_47 = arith.constant 0 : index
    %c4 = arith.constant 4 : index
    %52 = vector.load %arg11[%c0_47, %c4] : memref<32x32xf32, #tpu.memory_space<vmem>>, vector<32x16xf32>
    %c0_48 = arith.constant 0 : index
    %c12 = arith.constant 12 : index
    %53 = vector.load %arg11[%c0_48, %c12] : memref<32x32xf32, #tpu.memory_space<vmem>>, vector<32x16xf32>
    %54 = tpu.concatenate %52, %50, %53 in 0 : vector<32x16xf32>, vector<32x16xf32>, vector<32x16xf32> -> vector<96x16xf32>
    %c2 = arith.constant 2 : index
    %c0_49 = arith.constant 0 : index
    %c0_50 = arith.constant 0 : index
    %55 = vector.load %arg4[%c2, %c0_49, %c0_50] : memref<4x32x96xf32, #tpu.memory_space<vmem>>, vector<1x32x96xf32>
    %56 = vector.shape_cast %55 : vector<1x32x96xf32> to vector<32x96xf32>
    %cst_51 = arith.constant dense<0.000000e+00> : vector<32x16xf32>
    %57 = tpu.matmul %56, %54, %cst_51 {dimension_numbers = #tpu.dot_dimension_numbers<[1], [0], [0], [1], [0, 0, 1, 1], [], []>} : vector<32x96xf32>, vector<96x16xf32>, vector<32x16xf32> -> vector<32x16xf32>
    %c2_52 = arith.constant 2 : index
    %c0_53 = arith.constant 0 : index
    %c0_54 = arith.constant 0 : index
    %58 = vector.load %arg5[%c2_52, %c0_53, %c0_54] : memref<4x32x1xf32, #tpu.memory_space<vmem>>, vector<1x32x1xf32>
    %59 = vector.shape_cast %58 : vector<1x32x1xf32> to vector<32x1xf32>
    %60 = vector.broadcast %59 : vector<32x1xf32> to vector<32x16xf32>
    %61 = arith.addf %57, %60 : vector<32x16xf32>
    %cst_55 = arith.constant 0.000000e+00 : f32
    %62 = vector.broadcast %cst_55 : f32 to vector<32x16xf32>
    %63 = arith.maximumf %61, %62 : vector<32x16xf32>
    %c2_56 = arith.constant 2 : index
    %c0_57 = arith.constant 0 : index
    %c0_58 = arith.constant 0 : index
    %64 = vector.load %arg6[%c2_56, %c0_57, %c0_58] : memref<4x32x32xf32, #tpu.memory_space<vmem>>, vector<1x32x32xf32>
    %65 = vector.shape_cast %64 : vector<1x32x32xf32> to vector<32x32xf32>
    %cst_59 = arith.constant dense<0.000000e+00> : vector<32x16xf32>
    %66 = tpu.matmul %65, %63, %cst_59 {dimension_numbers = #tpu.dot_dimension_numbers<[1], [0], [0], [1], [0, 0, 1, 1], [], []>} : vector<32x32xf32>, vector<32x16xf32>, vector<32x16xf32> -> vector<32x16xf32>
    %c2_60 = arith.constant 2 : index
    %c0_61 = arith.constant 0 : index
    %c0_62 = arith.constant 0 : index
    %67 = vector.load %arg7[%c2_60, %c0_61, %c0_62] : memref<4x32x1xf32, #tpu.memory_space<vmem>>, vector<1x32x1xf32>
    %68 = vector.shape_cast %67 : vector<1x32x1xf32> to vector<32x1xf32>
    %69 = vector.broadcast %68 : vector<32x1xf32> to vector<32x16xf32>
    %70 = arith.addf %66, %69 : vector<32x16xf32>
    %71 = arith.addf %50, %70 : vector<32x16xf32>
    %c0_63 = arith.constant 0 : index
    %c8_64 = arith.constant 8 : index
    %72 = vector.load %arg11[%c0_63, %c8_64] : memref<32x32xf32, #tpu.memory_space<vmem>>, vector<32x16xf32>
    tpu.vector_store %arg11[%c0_63, %c8_64], %71 {strides = array<i32>} : memref<32x32xf32, #tpu.memory_space<vmem>>, vector<32x16xf32>,
    %c0_65 = arith.constant 0 : index
    %c0_66 = arith.constant 0 : index
    %73 = vector.load %arg11[%c0_65, %c0_66] : memref<32x32xf32, #tpu.memory_space<vmem>>, vector<32x16xf32>
    %c0_67 = arith.constant 0 : index
    %c16 = arith.constant 16 : index
    %74 = vector.load %arg11[%c0_67, %c16] : memref<32x32xf32, #tpu.memory_space<vmem>>, vector<32x16xf32>
    %75 = tpu.concatenate %73, %71, %74 in 0 : vector<32x16xf32>, vector<32x16xf32>, vector<32x16xf32> -> vector<96x16xf32>
    %c3 = arith.constant 3 : index
    %c0_68 = arith.constant 0 : index
    %c0_69 = arith.constant 0 : index
    %76 = vector.load %arg4[%c3, %c0_68, %c0_69] : memref<4x32x96xf32, #tpu.memory_space<vmem>>, vector<1x32x96xf32>
    %77 = vector.shape_cast %76 : vector<1x32x96xf32> to vector<32x96xf32>
    %cst_70 = arith.constant dense<0.000000e+00> : vector<32x16xf32>
    %78 = tpu.matmul %77, %75, %cst_70 {dimension_numbers = #tpu.dot_dimension_numbers<[1], [0], [0], [1], [0, 0, 1, 1], [], []>} : vector<32x96xf32>, vector<96x16xf32>, vector<32x16xf32> -> vector<32x16xf32>
    %c3_71 = arith.constant 3 : index
    %c0_72 = arith.constant 0 : index
    %c0_73 = arith.constant 0 : index
    %79 = vector.load %arg5[%c3_71, %c0_72, %c0_73] : memref<4x32x1xf32, #tpu.memory_space<vmem>>, vector<1x32x1xf32>
    %80 = vector.shape_cast %79 : vector<1x32x1xf32> to vector<32x1xf32>
    %81 = vector.broadcast %80 : vector<32x1xf32> to vector<32x16xf32>
    %82 = arith.addf %78, %81 : vector<32x16xf32>
    %cst_74 = arith.constant 0.000000e+00 : f32
    %83 = vector.broadcast %cst_74 : f32 to vector<32x16xf32>
    %84 = arith.maximumf %82, %83 : vector<32x16xf32>
    %c3_75 = arith.constant 3 : index
    %c0_76 = arith.constant 0 : index
    %c0_77 = arith.constant 0 : index
    %85 = vector.load %arg6[%c3_75, %c0_76, %c0_77] : memref<4x32x32xf32, #tpu.memory_space<vmem>>, vector<1x32x32xf32>
    %86 = vector.shape_cast %85 : vector<1x32x32xf32> to vector<32x32xf32>
    %cst_78 = arith.constant dense<0.000000e+00> : vector<32x16xf32>
    %87 = tpu.matmul %86, %84, %cst_78 {dimension_numbers = #tpu.dot_dimension_numbers<[1], [0], [0], [1], [0, 0, 1, 1], [], []>} : vector<32x32xf32>, vector<32x16xf32>, vector<32x16xf32> -> vector<32x16xf32>
    %c3_79 = arith.constant 3 : index
    %c0_80 = arith.constant 0 : index
    %c0_81 = arith.constant 0 : index
    %88 = vector.load %arg7[%c3_79, %c0_80, %c0_81] : memref<4x32x1xf32, #tpu.memory_space<vmem>>, vector<1x32x1xf32>
    %89 = vector.shape_cast %88 : vector<1x32x1xf32> to vector<32x1xf32>
    %90 = vector.broadcast %89 : vector<32x1xf32> to vector<32x16xf32>
    %91 = arith.addf %87, %90 : vector<32x16xf32>
    %92 = arith.addf %71, %91 : vector<32x16xf32>
    %c0_82 = arith.constant 0 : index
    %c8_83 = arith.constant 8 : index
    %93 = vector.load %arg11[%c0_82, %c8_83] : memref<32x32xf32, #tpu.memory_space<vmem>>, vector<32x16xf32>
    tpu.vector_store %arg11[%c0_82, %c8_83], %92 {strides = array<i32>} : memref<32x32xf32, #tpu.memory_space<vmem>>, vector<32x16xf32>,
    %c0_84 = arith.constant 0 : index
    %c7_85 = arith.constant 7 : index
    %94 = vector.load %arg11[%c0_84, %c7_85] : memref<32x32xf32, #tpu.memory_space<vmem>>, vector<32x16xf32>
    %c0_86 = arith.constant 0 : index
    %c9_87 = arith.constant 9 : index
    %95 = vector.load %arg11[%c0_86, %c9_87] : memref<32x32xf32, #tpu.memory_space<vmem>>, vector<32x16xf32>
    %96 = tpu.concatenate %94, %92, %95 in 0 : vector<32x16xf32>, vector<32x16xf32>, vector<32x16xf32> -> vector<96x16xf32>
    %c0_88 = arith.constant 0 : index
    %c0_89 = arith.constant 0 : index
    %97 = vector.load %arg8[%c0_88, %c0_89] : memref<8x96xf32, #tpu.memory_space<vmem>>, vector<8x96xf32>
    %cst_90 = arith.constant dense<0.000000e+00> : vector<8x16xf32>
    %98 = tpu.matmul %97, %96, %cst_90 {dimension_numbers = #tpu.dot_dimension_numbers<[1], [0], [0], [1], [0, 0, 1, 1], [], []>} : vector<8x96xf32>, vector<96x16xf32>, vector<8x16xf32> -> vector<8x16xf32>
    %c0_91 = arith.constant 0 : index
    %c0_92 = arith.constant 0 : index
    %99 = vector.load %arg9[%c0_91, %c0_92] : memref<8x1xf32, #tpu.memory_space<vmem>>, vector<8x1xf32>
    %100 = vector.broadcast %99 : vector<8x1xf32> to vector<8x16xf32>
    %101 = arith.addf %98, %100 : vector<8x16xf32>
    %cst_93 = arith.constant 0.000000e+00 : f32
    %102 = vector.broadcast %cst_93 : f32 to vector<8x16xf32>
    %103 = arith.maximumf %101, %102 : vector<8x16xf32>
    %104 = tpu.iota {dimensions = array<i32: 0>} : vector<16x8xi32>
    %105 = tpu.iota {dimensions = array<i32: 1>} : vector<16x8xi32>
    %c2_i32 = arith.constant 2 : i32
    %106 = vector.broadcast %c2_i32 : i32 to vector<16x8xi32>
    %107 = arith.muli %106, %105 : vector<16x8xi32>
    %108 = arith.cmpi eq, %104, %107 : vector<16x8xi32>
    %109 = arith.extui %108 : vector<16x8xi1> to vector<16x8xi32>
    %110 = arith.sitofp %109 : vector<16x8xi32> to vector<16x8xf32>
    %cst_94 = arith.constant dense<0.000000e+00> : vector<8x8xf32>
    %111 = tpu.matmul %103, %110, %cst_94 {dimension_numbers = #tpu.dot_dimension_numbers<[1], [0], [0], [1], [0, 0, 1, 1], [], []>} : vector<8x16xf32>, vector<16x8xf32>, vector<8x8xf32> -> vector<8x8xf32>
    %c0_95 = arith.constant 0 : index
    %c0_96 = arith.constant 0 : index
    %c0_97 = arith.constant 0 : index
    %112 = vector.load %arg10[%c0_95, %c0_96, %c0_97] : memref<1x8x8xf32, #tpu.memory_space<vmem>>, vector<1x8x8xf32>
    %113 = vector.shape_cast %112 : vector<1x8x8xf32> to vector<8x8xf32>
    %114 = vector.shape_cast %111 : vector<8x8xf32> to vector<1x8x8xf32>
    tpu.vector_store %arg10[%c0_95, %c0_96, %c0_97], %114 {strides = array<i32>} : memref<1x8x8xf32, #tpu.memory_space<vmem>>, vector<1x8x8xf32>,
    return
  }
  func.func @transform_0(%arg0: i32) -> (i32, i32, i32) {
    %c0_i32 = arith.constant 0 : i32
    %c0_i32_0 = arith.constant 0 : i32
    %c0_i32_1 = arith.constant 0 : i32
    return %arg0, %c0_i32, %c0_i32_0 : i32, i32, i32
  }
  func.func @transform_1(%arg0: i32) -> (i32, i32) {
    %c0_i32 = arith.constant 0 : i32
    %c0_i32_0 = arith.constant 0 : i32
    %c0_i32_1 = arith.constant 0 : i32
    return %c0_i32, %c0_i32_0 : i32, i32
  }
  func.func @transform_2(%arg0: i32) -> (i32, i32) {
    %c0_i32 = arith.constant 0 : i32
    %c0_i32_0 = arith.constant 0 : i32
    %c0_i32_1 = arith.constant 0 : i32
    return %c0_i32, %c0_i32_0 : i32, i32
  }
  func.func @transform_3(%arg0: i32) -> (i32, i32, i32) {
    %c0_i32 = arith.constant 0 : i32
    %c0_i32_0 = arith.constant 0 : i32
    %c0_i32_1 = arith.constant 0 : i32
    %c0_i32_2 = arith.constant 0 : i32
    return %c0_i32, %c0_i32_0, %c0_i32_1 : i32, i32, i32
  }
  func.func @transform_4(%arg0: i32) -> (i32, i32, i32) {
    %c0_i32 = arith.constant 0 : i32
    %c0_i32_0 = arith.constant 0 : i32
    %c0_i32_1 = arith.constant 0 : i32
    %c0_i32_2 = arith.constant 0 : i32
    return %c0_i32, %c0_i32_0, %c0_i32_1 : i32, i32, i32
  }
  func.func @transform_5(%arg0: i32) -> (i32, i32, i32) {
    %c0_i32 = arith.constant 0 : i32
    %c0_i32_0 = arith.constant 0 : i32
    %c0_i32_1 = arith.constant 0 : i32
    %c0_i32_2 = arith.constant 0 : i32
    return %c0_i32, %c0_i32_0, %c0_i32_1 : i32, i32, i32
  }
  func.func @transform_6(%arg0: i32) -> (i32, i32, i32) {
    %c0_i32 = arith.constant 0 : i32
    %c0_i32_0 = arith.constant 0 : i32
    %c0_i32_1 = arith.constant 0 : i32
    %c0_i32_2 = arith.constant 0 : i32
    return %c0_i32, %c0_i32_0, %c0_i32_1 : i32, i32, i32
  }
  func.func @transform_7(%arg0: i32) -> (i32, i32) {
    %c0_i32 = arith.constant 0 : i32
    %c0_i32_0 = arith.constant 0 : i32
    %c0_i32_1 = arith.constant 0 : i32
    return %c0_i32, %c0_i32_0 : i32, i32
  }
  func.func @transform_8(%arg0: i32) -> (i32, i32) {
    %c0_i32 = arith.constant 0 : i32
    %c0_i32_0 = arith.constant 0 : i32
    %c0_i32_1 = arith.constant 0 : i32
    return %c0_i32, %c0_i32_0 : i32, i32
  }
  func.func @transform_9(%arg0: i32) -> (i32, i32, i32) {
    %c0_i32 = arith.constant 0 : i32
    %c0_i32_0 = arith.constant 0 : i32
    %c0_i32_1 = arith.constant 0 : i32
    return %arg0, %c0_i32, %c0_i32_0 : i32, i32, i32
  }
}

</mosaic_0001>

<llo_original>
// kernel: single_stage_forward.1
$region0: #{single_stage_forward.1}
  #allocation0 [shape = 'u32[]', space=smem, size = 0x4, offset = 0x4, fixed_abs, tag = 'smem constant byte address 0x4 - core index']
  #allocation1 [shape = 'u32[144,128]{1,0:T(1,128)}', space=vmem, size = 0x12000, scoped, tag = 'internal scratch']
  #allocation2 [shape = 'f32[32,32]{1,0:T(8,128)}', space=vmem, size = 0x4000, scoped, tag = 'scratch operand']
  %s0 = inlined_call_operand.vmem [shape: f32[2,16,16], index: 0, kind: input, shape index: {}]
  %s1 = inlined_call_operand.vmem [shape: f32[32,16], index: 1, kind: input, shape index: {}]
  %s2 = inlined_call_operand.vmem [shape: f32[32,1], index: 2, kind: input, shape index: {}]
  %s3 = inlined_call_operand.vmem [shape: f32[4,32,96], index: 3, kind: input, shape index: {}]
  %s4 = inlined_call_operand.vmem [shape: f32[4,32,1], index: 4, kind: input, shape index: {}]
  %s5 = inlined_call_operand.vmem [shape: f32[4,32,32], index: 5, kind: input, shape index: {}]
  %s6 = inlined_call_operand.vmem [shape: f32[4,32,1], index: 6, kind: input, shape index: {}]
  %s7 = inlined_call_operand.vmem [shape: f32[8,96], index: 7, kind: input, shape index: {}]
  %s8 = inlined_call_operand.vmem [shape: f32[8,1], index: 8, kind: input, shape index: {}]
  %s9 = inlined_call_operand.hbm [shape: f32[2,8,8], index: 9, kind: output, shape index: {}]
  %s10 = sld [smem:[#allocation0]]
  $region69: #{single_stage_forward.1} parent=0
    _
  %s12 = ssub.s32 1, %s10
  %s13 = scalar_select 0, %s12, %s10
  $region1: #{single_stage_forward.1} parent=0
    #allocation3 [shape = 'u8[8192]{0}', space=vmem, size = 0x2000, scoped, tag = 'output window, operand 0']
    #allocation4 [shape = 's32[2]{0}', space=sflag, size = 0x8, scoped, tag = 'scoped memory for single_stage_forward.1']
    %14 = vsyncpa [#allocation4], 0
    %s15 = scalar_lea.sflag [#allocation4], 1
    %16 = vsyncpa %s15, 0
    loop: start=0, step=1, limit=4
    $region2: #{single_stage_forward.1} parent=1 // loop_pre_header
      _
    $region3: #{single_stage_forward.1} parent=1 // loop_header
      %s18 = sphi 0, %s22
      %p19 = scmp.ge.s32.totalorder %s18, 4
      %s28 = sphi 0, %s30
      %s31 = sphi 0, %s28
      %s32 = sphi 0, %s31
      %s48 = sphi 0, %s32
      %s52 = sphi 0, %s52
      %s54 = sphi 0, %s52
      %s55 = sphi 0, %s54
      %s69 = sphi 0, %s55
      %s73 = sphi 0, %s73
      %s75 = sphi 0, %s73
      %s76 = sphi 0, %s75
      %s90 = sphi 0, %s76
      %s94 = sphi 0, %s94
      %s96 = sphi 0, %s94
      %s97 = sphi 0, %s96
      %s111 = sphi 0, %s97
      %s115 = sphi 0, %s115
      %s117 = sphi 0, %s115
      %s118 = sphi 0, %s117
      %s132 = sphi 0, %s118
      %s136 = sphi 0, %s136
      %s138 = sphi 0, %s136
      %s139 = sphi 0, %s138
      %s153 = sphi 0, %s139
      %s157 = sphi 0, %s157
      %s159 = sphi 0, %s157
      %s160 = sphi 0, %s159
      %s174 = sphi 0, %s160
      %s178 = sphi 0, %s178
      %s180 = sphi 0, %s178
      %s181 = sphi 0, %s180
      %s195 = sphi 0, %s181
      %s199 = sphi 0, %s199
      %s201 = sphi 0, %s199
      %s202 = sphi 0, %s201
      %s216 = sphi 0, %s202
      %s222 = sphi 0, %s224
      %s225 = sphi 0, %s222
      %s226 = sphi 0, %s225
      %s242 = sphi 0, %s226
    $region4: #{single_stage_forward.1} parent=1 // loop_header_branch
      %21 = sbr.rel (%p19) target = $region8
    $region5: #{single_stage_forward.1} parent=1 // loop_body
      %s23 = ssub.s32 %s18, 1
      %s24 = ssub.s32 %s18, 2
      %s25 = sadd.s32 %s18, 1
      %s26 = ssub.s32 %s18, %s25
      %p27 = scmp.eq.s32.totalorder %s26, 0
      %s29 = sadd.s32 %s28, 1
      %s30 = scalar_select %p27, %s28, %s29
      %p33 = pneg %p27
      %p34 = scmp.eq.s32.totalorder %s18, 1
      %p35 = por %p33, %p34
      %p36 = scmp.ne.s32.totalorder %s28, %s31
      %p37 = scmp.eq.s32.totalorder %s18, 0
      %p38 = por %p36, %p37
      %p39 = scmp.ne.s32.totalorder %s28, %s31
      %p40 = scmp.eq.s32.totalorder %s23, 1
      %p41 = por %p39, %p40
      %p42 = scmp.ne.s32.totalorder %s31, %s32
      %p43 = scmp.eq.s32.totalorder %s23, 0
      %p44 = por %p42, %p43
      %p45 = scmp.ne.s32.totalorder %s31, %s32
      %p46 = scmp.eq.s32.totalorder %s24, 1
      %p47 = por %p45, %p46
      %p49 = scmp.ne.s32.totalorder %s32, %s48
      %p50 = scmp.eq.s32.totalorder %s24, 0
      %p51 = por %p49, %p50
      %s53 = sadd.s32 %s52, 1
      %p56 = scmp.eq.s32.totalorder %s18, 1
      %p57 = scmp.ne.s32.totalorder %s52, %s54
      %p58 = scmp.eq.s32.totalorder %s18, 0
      %p59 = por %p57, %p58
      %p60 = scmp.ne.s32.totalorder %s52, %s54
      %p61 = scmp.eq.s32.totalorder %s23, 1
      %p62 = por %p60, %p61
      %p63 = scmp.ne.s32.totalorder %s54, %s55
      %p64 = scmp.eq.s32.totalorder %s23, 0
      %p65 = por %p63, %p64
      %p66 = scmp.ne.s32.totalorder %s54, %s55
      %p67 = scmp.eq.s32.totalorder %s24, 1
      %p68 = por %p66, %p67
      %p70 = scmp.ne.s32.totalorder %s55, %s69
      %p71 = scmp.eq.s32.totalorder %s24, 0
      %p72 = por %p70, %p71
      %s74 = sadd.s32 %s73, 1
      %p77 = scmp.eq.s32.totalorder %s18, 1
      %p78 = scmp.ne.s32.totalorder %s73, %s75
      %p79 = scmp.eq.s32.totalorder %s18, 0
      %p80 = por %p78, %p79
      %p81 = scmp.ne.s32.totalorder %s73, %s75
      %p82 = scmp.eq.s32.totalorder %s23, 1
      %p83 = por %p81, %p82
      %p84 = scmp.ne.s32.totalorder %s75, %s76
      %p85 = scmp.eq.s32.totalorder %s23, 0
      %p86 = por %p84, %p85
      %p87 = scmp.ne.s32.totalorder %s75, %s76
      %p88 = scmp.eq.s32.totalorder %s24, 1
      %p89 = por %p87, %p88
      %p91 = scmp.ne.s32.totalorder %s76, %s90
      %p92 = scmp.eq.s32.totalorder %s24, 0
      %p93 = por %p91, %p92
      %s95 = sadd.s32 %s94, 1
      %p98 = scmp.eq.s32.totalorder %s18, 1
      %p99 = scmp.ne.s32.totalorder %s94, %s96
      %p100 = scmp.eq.s32.totalorder %s18, 0
      %p101 = por %p99, %p100
      %p102 = scmp.ne.s32.totalorder %s94, %s96
      %p103 = scmp.eq.s32.totalorder %s23, 1
      %p104 = por %p102, %p103
      %p105 = scmp.ne.s32.totalorder %s96, %s97
      %p106 = scmp.eq.s32.totalorder %s23, 0
      %p107 = por %p105, %p106
      %p108 = scmp.ne.s32.totalorder %s96, %s97
      %p109 = scmp.eq.s32.totalorder %s24, 1
      %p110 = por %p108, %p109
      %p112 = scmp.ne.s32.totalorder %s97, %s111
      %p113 = scmp.eq.s32.totalorder %s24, 0
      %p114 = por %p112, %p113
      %s116 = sadd.s32 %s115, 1
      %p119 = scmp.eq.s32.totalorder %s18, 1
      %p120 = scmp.ne.s32.totalorder %s115, %s117
      %p121 = scmp.eq.s32.totalorder %s18, 0
      %p122 = por %p120, %p121
      %p123 = scmp.ne.s32.totalorder %s115, %s117
      %p124 = scmp.eq.s32.totalorder %s23, 1
      %p125 = por %p123, %p124
      %p126 = scmp.ne.s32.totalorder %s117, %s118
      %p127 = scmp.eq.s32.totalorder %s23, 0
      %p128 = por %p126, %p127
      %p129 = scmp.ne.s32.totalorder %s117, %s118
      %p130 = scmp.eq.s32.totalorder %s24, 1
      %p131 = por %p129, %p130
      %p133 = scmp.ne.s32.totalorder %s118, %s132
      %p134 = scmp.eq.s32.totalorder %s24, 0
      %p135 = por %p133, %p134
      %s137 = sadd.s32 %s136, 1
      %p140 = scmp.eq.s32.totalorder %s18, 1
      %p141 = scmp.ne.s32.totalorder %s136, %s138
      %p142 = scmp.eq.s32.totalorder %s18, 0
      %p143 = por %p141, %p142
      %p144 = scmp.ne.s32.totalorder %s136, %s138
      %p145 = scmp.eq.s32.totalorder %s23, 1
      %p146 = por %p144, %p145
      %p147 = scmp.ne.s32.totalorder %s138, %s139
      %p148 = scmp.eq.s32.totalorder %s23, 0
      %p149 = por %p147, %p148
      %p150 = scmp.ne.s32.totalorder %s138, %s139
      %p151 = scmp.eq.s32.totalorder %s24, 1
      %p152 = por %p150, %p151
      %p154 = scmp.ne.s32.totalorder %s139, %s153
      %p155 = scmp.eq.s32.totalorder %s24, 0
      %p156 = por %p154, %p155
      %s158 = sadd.s32 %s157, 1
      %p161 = scmp.eq.s32.totalorder %s18, 1
      %p162 = scmp.ne.s32.totalorder %s157, %s159
      %p163 = scmp.eq.s32.totalorder %s18, 0
      %p164 = por %p162, %p163
      %p165 = scmp.ne.s32.totalorder %s157, %s159
      %p166 = scmp.eq.s32.totalorder %s23, 1
      %p167 = por %p165, %p166
      %p168 = scmp.ne.s32.totalorder %s159, %s160
      %p169 = scmp.eq.s32.totalorder %s23, 0
      %p170 = por %p168, %p169
      %p171 = scmp.ne.s32.totalorder %s159, %s160
      %p172 = scmp.eq.s32.totalorder %s24, 1
      %p173 = por %p171, %p172
      %p175 = scmp.ne.s32.totalorder %s160, %s174
      %p176 = scmp.eq.s32.totalorder %s24, 0
      %p177 = por %p175, %p176
      %s179 = sadd.s32 %s178, 1
      %p182 = scmp.eq.s32.totalorder %s18, 1
      %p183 = scmp.ne.s32.totalorder %s178, %s180
      %p184 = scmp.eq.s32.totalorder %s18, 0
      %p185 = por %p183, %p184
      %p186 = scmp.ne.s32.totalorder %s178, %s180
      %p187 = scmp.eq.s32.totalorder %s23, 1
      %p188 = por %p186, %p187
      %p189 = scmp.ne.s32.totalorder %s180, %s181
      %p190 = scmp.eq.s32.totalorder %s23, 0
      %p191 = por %p189, %p190
      %p192 = scmp.ne.s32.totalorder %s180, %s181
      %p193 = scmp.eq.s32.totalorder %s24, 1
      %p194 = por %p192, %p193
      %p196 = scmp.ne.s32.totalorder %s181, %s195
      %p197 = scmp.eq.s32.totalorder %s24, 0
      %p198 = por %p196, %p197
      %s200 = sadd.s32 %s199, 1
      %p203 = scmp.eq.s32.totalorder %s18, 1
      %p204 = scmp.ne.s32.totalorder %s199, %s201
      %p205 = scmp.eq.s32.totalorder %s18, 0
      %p206 = por %p204, %p205
      %p207 = scmp.ne.s32.totalorder %s199, %s201
      %p208 = scmp.eq.s32.totalorder %s23, 1
      %p209 = por %p207, %p208
      %p210 = scmp.ne.s32.totalorder %s201, %s202
      %p211 = scmp.eq.s32.totalorder %s23, 0
      %p212 = por %p210, %p211
      %p213 = scmp.ne.s32.totalorder %s201, %s202
      %p214 = scmp.eq.s32.totalorder %s24, 1
      %p215 = por %p213, %p214
      %p217 = scmp.ne.s32.totalorder %s202, %s216
      %p218 = scmp.eq.s32.totalorder %s24, 0
      %p219 = por %p217, %p218
      %s220 = ssub.s32 %s18, %s25
      %p221 = scmp.eq.s32.totalorder %s220, 0
      %s223 = sadd.s32 %s222, 1
      %s224 = scalar_select %p221, %s222, %s223
      %p227 = pneg %p221
      %p228 = scmp.eq.s32.totalorder %s18, 1
      %p229 = por %p227, %p228
      %p230 = scmp.ne.s32.totalorder %s222, %s225
      %p231 = scmp.eq.s32.totalorder %s18, 0
      %p232 = por %p230, %p231
      %p233 = scmp.ne.s32.totalorder %s222, %s225
      %p234 = scmp.eq.s32.totalorder %s23, 1
      %p235 = por %p233, %p234
      %p236 = scmp.ne.s32.totalorder %s225, %s226
      %p237 = scmp.eq.s32.totalorder %s23, 0
      %p238 = por %p236, %p237
      %p239 = scmp.ne.s32.totalorder %s225, %s226
      %p240 = scmp.eq.s32.totalorder %s24, 1
      %p241 = por %p239, %p240
      %p243 = scmp.ne.s32.totalorder %s226, %s242
      %p244 = scmp.eq.s32.totalorder %s24, 0
      %p245 = por %p243, %p244
      %p246 = scmp.le.s32.totalorder 1, %s18
      %p247 = scmp.lt.s32.totalorder %s18, 3
      %p248 = pnand %p246, %p247
      %p249 = pneg %p248
      // Predicated region
      $region9: #{single_stage_forward.1} parent=5 // pred_check
        _
      $region10: #{single_stage_forward.1} parent=5 // pred_check_branch
        %251 = sbr.rel (%p248) target = $region12
      $region11: #{single_stage_forward.1} parent=5 // pred_region
        %s252 = ssub.s32 %s18, 1
        // Predicated region
        $region13: #{single_stage_forward.1} parent=11 // pred_check
          %p253 = pneg %p65
        $region14: #{single_stage_forward.1} parent=11 // pred_check_branch
          %255 = sbr.rel (%p253) target = $region16
        $region15: #{single_stage_forward.1} parent=11 // pred_region
          _
        $region16: #{single_stage_forward.1} parent=11 // pred_fallthru
          _
        // Predicated region
        $region17: #{single_stage_forward.1} parent=11 // pred_check
          %p256 = pneg %p86
        $region18: #{single_stage_forward.1} parent=11 // pred_check_branch
          %258 = sbr.rel (%p256) target = $region20
        $region19: #{single_stage_forward.1} parent=11 // pred_region
          _
        $region20: #{single_stage_forward.1} parent=11 // pred_fallthru
          _
        // Predicated region
        $region21: #{single_stage_forward.1} parent=11 // pred_check
          %p259 = pneg %p107
        $region22: #{single_stage_forward.1} parent=11 // pred_check_branch
          %261 = sbr.rel (%p259) target = $region24
        $region23: #{single_stage_forward.1} parent=11 // pred_region
          _
        $region24: #{single_stage_forward.1} parent=11 // pred_fallthru
          _
        // Predicated region
        $region25: #{single_stage_forward.1} parent=11 // pred_check
          %p262 = pneg %p128
        $region26: #{single_stage_forward.1} parent=11 // pred_check_branch
          %264 = sbr.rel (%p262) target = $region28
        $region27: #{single_stage_forward.1} parent=11 // pred_region
          _
        $region28: #{single_stage_forward.1} parent=11 // pred_fallthru
          _
        // Predicated region
        $region29: #{single_stage_forward.1} parent=11 // pred_check
          %p265 = pneg %p149
        $region30: #{single_stage_forward.1} parent=11 // pred_check_branch
          %267 = sbr.rel (%p265) target = $region32
        $region31: #{single_stage_forward.1} parent=11 // pred_region
          _
        $region32: #{single_stage_forward.1} parent=11 // pred_fallthru
          _
        // Predicated region
        $region33: #{single_stage_forward.1} parent=11 // pred_check
          %p268 = pneg %p170
        $region34: #{single_stage_forward.1} parent=11 // pred_check_branch
          %270 = sbr.rel (%p268) target = $region36
        $region35: #{single_stage_forward.1} parent=11 // pred_region
          _
        $region36: #{single_stage_forward.1} parent=11 // pred_fallthru
          _
        // Predicated region
        $region37: #{single_stage_forward.1} parent=11 // pred_check
          %p271 = pneg %p191
        $region38: #{single_stage_forward.1} parent=11 // pred_check_branch
          %273 = sbr.rel (%p271) target = $region40
        $region39: #{single_stage_forward.1} parent=11 // pred_region
          _
        $region40: #{single_stage_forward.1} parent=11 // pred_fallthru
          _
        // Predicated region
        $region41: #{single_stage_forward.1} parent=11 // pred_check
          %p274 = pneg %p212
        $region42: #{single_stage_forward.1} parent=11 // pred_check_branch
          %276 = sbr.rel (%p274) target = $region44
        $region43: #{single_stage_forward.1} parent=11 // pred_region
          _
        $region44: #{single_stage_forward.1} parent=11 // pred_fallthru
          _
      $region12: #{single_stage_forward.1} parent=5 // pred_fallthru
        _
      %p277 = scmp.lt.s32.totalorder %s18, 2
      // Predicated region
      $region45: #{single_stage_forward.1} parent=5 // pred_check
        %p278 = pneg %p277
      $region46: #{single_stage_forward.1} parent=5 // pred_check_branch
        %280 = sbr.rel (%p278) target = $region48
      $region47: #{single_stage_forward.1} parent=5 // pred_region
        // Predicated region
        $region49: #{single_stage_forward.1} parent=47 // pred_check
          %p281 = pneg %p38
        $region50: #{single_stage_forward.1} parent=47 // pred_check_branch
          %283 = sbr.rel (%p281) target = $region52
        $region51: #{single_stage_forward.1} parent=47 // pred_region
          %p284 = scmp.lt.s32.totalorder %s18, 1
          %s285 = scalar_select %p284, %s18, 1
          %s286 = smul.addr %s285, 2
          %s287 = smul.addr %s286, 8
          %s288 = scalar_lea.vmem %s0, %s287
        $region52: #{single_stage_forward.1} parent=47 // pred_fallthru
          _
      $region48: #{single_stage_forward.1} parent=5 // pred_fallthru
        _
      %p289 = scmp.le.s32.totalorder 1, %s18
      %p290 = scmp.lt.s32.totalorder %s18, 3
      %p291 = pnand %p289, %p290
      %p292 = pneg %p291
      // Predicated region
      $region53: #{single_stage_forward.1} parent=5 // pred_check
        _
      $region54: #{single_stage_forward.1} parent=5 // pred_check_branch
        %294 = sbr.rel (%p291) target = $region56
      $region55: #{single_stage_forward.1} parent=5 // pred_region
        %s295 = ssub.s32 %s18, 1
        %p296 = scmp.lt.s32.totalorder %s23, 1
        %s297 = scalar_select %p296, %s23, 1
        %s298 = smul.addr %s297, 2
        %s299 = smul.addr %s298, 8
        %s300 = scalar_lea.vmem %s0, %s299
        %p301 = pneg %p44
        %p302 = pneg %p41
        %p303 = pneg %p65
        %p304 = pneg %p62
        %p305 = pneg %p86
        %p306 = pneg %p83
        %p307 = pneg %p107
        %p308 = pneg %p104
        %p309 = pneg %p128
        %p310 = pneg %p125
        %p311 = pneg %p149
        %p312 = pneg %p146
        %p313 = pneg %p170
        %p314 = pneg %p167
        %p315 = pneg %p191
        %p316 = pneg %p188
        %p317 = pneg %p212
        %p318 = pneg %p209
        %p319 = pneg %p238
        %p320 = pneg %p235
        %s321 = sand.u32 %s225, 1
        %s322 = scalar_lea.sflag [#allocation4], %s321
        %s323 = sand.u32 %s225, 1
        %s324 = smul.addr %s323, 8
        %s325 = scalar_lea.vmem [#allocation3], %s324
        %p326 = scmp.lt.s32.totalorder %s23, 1
        %s327 = scalar_select %p326, %s23, 1
        %s328 = smul.addr %s327, 2
        %s329 = smul.addr %s328, 8
        %s330 = scalar_lea.vmem %s0, %s329
        %vm331 = vcmask 261120
        %332 = vst.msk [vmem:[#allocation2] sm:$0xff] %vm331, 0.0
        %333 = vst.msk [vmem:[#allocation2 + $0x8] sm:$0xff] %vm331, 0.0
        %334 = vst.msk [vmem:[#allocation2 + $0x10] sm:$0xff] %vm331, 0.0
        %335 = vst.msk [vmem:[#allocation2 + $0x18] sm:$0xff] %vm331, 0.0
        %v336 = vld [vmem:[%s330] sm:$0xff]
        %v337 = vld [vmem:[%s330 + $0x8] sm:$0xff]
        %v338 = vld [vmem:[%s1] sm:$0xff]
        %v339 = vld [vmem:[%s1 + $0x8] sm:$0xff]
        %v340 = vld [vmem:[%s1 + $0x10] sm:$0xff]
        %v341 = vld [vmem:[%s1 + $0x18] sm:$0xff]
        %v342 = vld [vmem:[%s2] sm:$0xff]
        %v343 = vld [vmem:[%s2 + $0x8] sm:$0xff]
        %v344 = vld [vmem:[%s2 + $0x10] sm:$0xff]
        %v345 = vld [vmem:[%s2 + $0x18] sm:$0xff]
        %347 = vset.pattern.permute.xlu0 0
        %348 = vperm.xlu0 %347, %v342
        %v349 = vpop.permute.xlu0 %348
        %352 = vset.pattern.permute.xlu0 0
        %353 = vperm.xlu0 %352, %v343
        %v354 = vpop.permute.xlu0 %353
        %357 = vset.pattern.permute.xlu0 0
        %358 = vperm.xlu0 %357, %v344
        %v359 = vpop.permute.xlu0 %358
        %362 = vset.pattern.permute.xlu0 0
        %363 = vperm.xlu0 %362, %v345
        %v364 = vpop.permute.xlu0 %363
        %vm366 = vcmask 130048
        %v368 = vsel %vm366, %v338, 0
        %v371 = vsel %vm366, %v339, 0
        %v374 = vsel %vm366, %v340, 0
        %v377 = vsel %vm366, %v341, 0
        %379 = vmatprep.subr.mxu0 0.0
        %380 = vmatpush1.msra.mxu0 %v336
        %381 = vmatprep.subr.mxu0 0.0
        %382 = vmatpush1.msra.mxu0 %v337
        %383 = vmatprep.subr.mxu0 0.0
        %384 = vmatpush1.msra.mxu0 0.0
        %385 = vmatprep.subr.mxu0 0.0
        %386 = vmatpush1.msra.mxu0 0.0
        %387 = vmatprep.subr.mxu0 0.0
        %388 = vmatpush1.msra.mxu0 0.0
        %389 = vmatprep.subr.mxu0 0.0
        %390 = vmatpush1.msra.mxu0 0.0
        %391 = vmatprep.subr.mxu0 0.0
        %392 = vmatpush1.msra.mxu0 0.0
        %393 = vmatprep.subr.mxu0 0.0
        %394 = vmatpush1.msra.mxu0 0.0
        %395 = vmatprep.subr.mxu0 0.0
        %396 = vmatpush1.msra.mxu0 0.0
        %397 = vmatprep.subr.mxu0 0.0
        %398 = vmatpush1.msra.mxu0 0.0
        %399 = vmatprep.subr.mxu0 0.0
        %400 = vmatpush1.msra.mxu0 0.0
        %401 = vmatprep.subr.mxu0 0.0
        %402 = vmatpush1.msra.mxu0 0.0
        %403 = vmatprep.subr.mxu0 0.0
        %404 = vmatpush1.msra.mxu0 0.0
        %405 = vmatprep.subr.mxu0 0.0
        %406 = vmatpush1.msra.mxu0 0.0
        %407 = vmatprep.subr.mxu0 0.0
        %408 = vmatpush1.msra.mxu0 0.0
        %409 = vmatprep.subr.mxu0 0.0
        %410 = vmatpush1.msra.mxu0 0.0
        %411 = vmatprep.subr.mxu0 0.0
        %412 = vmatpush1.msra.mxu0 0.0
        %413 = vmatprep.subr.mxu0 0.0
        %414 = vmatpush1.msra.mxu0 0.0
        %415 = vmatprep.subr.mxu0 0.0
        %416 = vmatpush1.msra.mxu0 0.0
        %417 = vmatprep.subr.mxu0 0.0
        %418 = vmatpush1.msra.mxu0 0.0
        %419 = vmatprep.subr.mxu0 0.0
        %420 = vmatpush1.msra.mxu0 0.0
        %421 = vmatprep.subr.mxu0 0.0
        %422 = vmatpush1.msra.mxu0 0.0
        %423 = vmatprep.subr.mxu0 0.0
        %424 = vmatpush1.msra.mxu0 0.0
        %425 = vmatprep.subr.mxu0 0.0
        %426 = vmatpush1.msra.mxu0 0.0
        %427 = vmatprep.subr.mxu0 0.0
        %428 = vmatpush1.msra.mxu0 0.0
        %429 = vmatprep.subr.mxu0 0.0
        %430 = vmatpush1.msra.mxu0 0.0
        %431 = vmatprep.subr.mxu0 0.0
        %432 = vmatpush1.msra.mxu0 0.0
        %433 = vmatprep.subr.mxu0 0.0
        %434 = vmatpush1.msra.mxu0 0.0
        %435 = vmatprep.subr.mxu0 0.0
        %436 = vmatpush1.msra.mxu0 0.0
        %437 = vmatprep.subr.mxu0 0.0
        %438 = vmatpush1.msra.mxu0 0.0
        %439 = vmatprep.subr.mxu0 0.0
        %440 = vmatpush1.msra.mxu0 0.0
        %441 = vmatprep.subr.mxu0 0.0
        %442 = vmatpush1.msra.mxu0 0.0
        %443 = vmatprep.mubr.f32.mxu0 0.0
        %444 = vmatmul.mubr.f32.gmra.mrb[0].mxu0 %v368
        %v445 = vpop.f32.mrb[0].mxu0
        %v446 = vadd.f32 %v349, %v445
        %v447 = vpop.f32.mrb[0].mxu0
        %448 = vmatprep.mubr.f32.mxu0 0.0
        %449 = vmatmul.mubr.f32.gmra.mrb[0].mxu0 %v371
        %v450 = vpop.f32.mrb[0].mxu0
        %v451 = vadd.f32 %v354, %v450
        %v452 = vpop.f32.mrb[0].mxu0
        %453 = vmatprep.mubr.f32.mxu0 0.0
        %454 = vmatmul.mubr.f32.gmra.mrb[0].mxu0 %v374
        %v455 = vpop.f32.mrb[0].mxu0
        %v456 = vadd.f32 %v359, %v455
        %v457 = vpop.f32.mrb[0].mxu0
        %458 = vmatprep.mubr.f32.mxu0 0.0
        %459 = vmatmul.mubr.f32.gmra.mrb[0].mxu0 %v377
        %v460 = vpop.f32.mrb[0].mxu0
        %v461 = vadd.f32 %v364, %v460
        %v462 = vpop.f32.mrb[0].mxu0
        %463 = vdwg.mxu0
        %468 = vrot.lane.b32.xlu0 %v446, 8
        %v469 = vpop.permute.xlu0 %468
        %470 = vrot.lane.b32.xlu0 %v451, 8
        %v471 = vpop.permute.xlu0 %470
        %472 = vrot.lane.b32.xlu0 %v456, 8
        %v473 = vpop.permute.xlu0 %472
        %474 = vrot.lane.b32.xlu0 %v461, 8
        %v475 = vpop.permute.xlu0 %474
        %vm480 = vcmask 195648
        %481 = vst.msk [vmem:[#allocation2] sm:$0xff] %vm480, %v469
        %482 = vst.msk [vmem:[#allocation2 + $0x8] sm:$0xff] %vm480, %v471
        %483 = vst.msk [vmem:[#allocation2 + $0x10] sm:$0xff] %vm480, %v473
        %484 = vst.msk [vmem:[#allocation2 + $0x18] sm:$0xff] %vm480, %v475
        %v485 = vld [vmem:[#allocation2] sm:$0xff]
        %v486 = vld [vmem:[#allocation2 + $0x8] sm:$0xff]
        %v487 = vld [vmem:[#allocation2 + $0x10] sm:$0xff]
        %v488 = vld [vmem:[#allocation2 + $0x18] sm:$0xff]
        %489 = vrot.lane.b32.xlu0 %v446, 7
        %v490 = vpop.permute.xlu0 %489
        %491 = vrot.lane.b32.xlu0 %v451, 7
        %v492 = vpop.permute.xlu0 %491
        %493 = vrot.lane.b32.xlu0 %v456, 7
        %v494 = vpop.permute.xlu0 %493
        %495 = vrot.lane.b32.xlu0 %v461, 7
        %v496 = vpop.permute.xlu0 %495
        %501 = vrot.lane.b32.xlu0 %v485, 126
        %v502 = vpop.permute.xlu0 %501
        %503 = vrot.lane.b32.xlu0 %v486, 126
        %v504 = vpop.permute.xlu0 %503
        %505 = vrot.lane.b32.xlu0 %v487, 126
        %v506 = vpop.permute.xlu0 %505
        %507 = vrot.lane.b32.xlu0 %v488, 126
        %v508 = vpop.permute.xlu0 %507
        %v509 = vld [vmem:[%s3] sm:$0xff]
        %v510 = vld [vmem:[%s3 + $0x8] sm:$0xff]
        %v511 = vld [vmem:[%s3 + $0x10] sm:$0xff]
        %v512 = vld [vmem:[%s3 + $0x18] sm:$0xff]
        %v513 = vld [vmem:[%s4] sm:$0xff]
        %v514 = vld [vmem:[%s4 + $0x8] sm:$0xff]
        %v515 = vld [vmem:[%s4 + $0x10] sm:$0xff]
        %v516 = vld [vmem:[%s4 + $0x18] sm:$0xff]
        %518 = vset.pattern.permute.xlu0 0
        %519 = vperm.xlu0 %518, %v513
        %v520 = vpop.permute.xlu0 %519
        %523 = vset.pattern.permute.xlu0 0
        %524 = vperm.xlu0 %523, %v514
        %v525 = vpop.permute.xlu0 %524
        %528 = vset.pattern.permute.xlu0 0
        %529 = vperm.xlu0 %528, %v515
        %v530 = vpop.permute.xlu0 %529
        %533 = vset.pattern.permute.xlu0 0
        %534 = vperm.xlu0 %533, %v516
        %v535 = vpop.permute.xlu0 %534
        %537 = vrot.lane.b32.xlu0 %v485, 121
        %v538 = vpop.permute.xlu0 %537
        %539 = vrot.lane.b32.xlu0 %v486, 121
        %v540 = vpop.permute.xlu0 %539
        %541 = vrot.lane.b32.xlu0 %v487, 121
        %v542 = vpop.permute.xlu0 %541
        %543 = vrot.lane.b32.xlu0 %v488, 121
        %v544 = vpop.permute.xlu0 %543
        %545 = vrot.lane.b32.xlu0 %v490, 121
        %v546 = vpop.permute.xlu0 %545
        %547 = vrot.lane.b32.xlu0 %v492, 121
        %v548 = vpop.permute.xlu0 %547
        %549 = vrot.lane.b32.xlu0 %v494, 121
        %v550 = vpop.permute.xlu0 %549
        %551 = vrot.lane.b32.xlu0 %v496, 121
        %v552 = vpop.permute.xlu0 %551
        %553 = vrot.lane.b32.xlu0 %v502, 121
        %v554 = vpop.permute.xlu0 %553
        %555 = vrot.lane.b32.xlu0 %v504, 121
        %v556 = vpop.permute.xlu0 %555
        %557 = vrot.lane.b32.xlu0 %v506, 121
        %v558 = vpop.permute.xlu0 %557
        %559 = vrot.lane.b32.xlu0 %v508, 121
        %v560 = vpop.permute.xlu0 %559
        %vm573 = vcmask 785408
        %v575 = vsel %vm573, %v509, 0
        %v578 = vsel %vm573, %v510, 0
        %v581 = vsel %vm573, %v511, 0
        %v584 = vsel %vm573, %v512, 0
        %586 = vmatprep.subr.mxu0 0.0
        %587 = vmatpush1.msra.mxu0 %v538
        %588 = vmatprep.subr.mxu0 0.0
        %589 = vmatpush1.msra.mxu0 %v540
        %590 = vmatprep.subr.mxu0 0.0
        %591 = vmatpush1.msra.mxu0 %v542
        %592 = vmatprep.subr.mxu0 0.0
        %593 = vmatpush1.msra.mxu0 %v544
        %594 = vmatprep.subr.mxu0 0.0
        %595 = vmatpush1.msra.mxu0 %v546
        %596 = vmatprep.subr.mxu0 0.0
        %597 = vmatpush1.msra.mxu0 %v548
        %598 = vmatprep.subr.mxu0 0.0
        %599 = vmatpush1.msra.mxu0 %v550
        %600 = vmatprep.subr.mxu0 0.0
        %601 = vmatpush1.msra.mxu0 %v552
        %602 = vmatprep.subr.mxu0 0.0
        %603 = vmatpush1.msra.mxu0 %v554
        %604 = vmatprep.subr.mxu0 0.0
        %605 = vmatpush1.msra.mxu0 %v556
        %606 = vmatprep.subr.mxu0 0.0
        %607 = vmatpush1.msra.mxu0 %v558
        %608 = vmatprep.subr.mxu0 0.0
        %609 = vmatpush1.msra.mxu0 %v560
        %610 = vmatprep.subr.mxu0 0.0
        %611 = vmatpush1.msra.mxu0 0.0
        %612 = vmatprep.subr.mxu0 0.0
        %613 = vmatpush1.msra.mxu0 0.0
        %614 = vmatprep.subr.mxu0 0.0
        %615 = vmatpush1.msra.mxu0 0.0
        %616 = vmatprep.subr.mxu0 0.0
        %617 = vmatpush1.msra.mxu0 0.0
        %618 = vmatprep.subr.mxu0 0.0
        %619 = vmatpush1.msra.mxu0 0.0
        %620 = vmatprep.subr.mxu0 0.0
        %621 = vmatpush1.msra.mxu0 0.0
        %622 = vmatprep.subr.mxu0 0.0
        %623 = vmatpush1.msra.mxu0 0.0
        %624 = vmatprep.subr.mxu0 0.0
        %625 = vmatpush1.msra.mxu0 0.0
        %626 = vmatprep.subr.mxu0 0.0
        %627 = vmatpush1.msra.mxu0 0.0
        %628 = vmatprep.subr.mxu0 0.0
        %629 = vmatpush1.msra.mxu0 0.0
        %630 = vmatprep.subr.mxu0 0.0
        %631 = vmatpush1.msra.mxu0 0.0
        %632 = vmatprep.subr.mxu0 0.0
        %633 = vmatpush1.msra.mxu0 0.0
        %634 = vmatprep.subr.mxu0 0.0
        %635 = vmatpush1.msra.mxu0 0.0
        %636 = vmatprep.subr.mxu0 0.0
        %637 = vmatpush1.msra.mxu0 0.0
        %638 = vmatprep.subr.mxu0 0.0
        %639 = vmatpush1.msra.mxu0 0.0
        %640 = vmatprep.subr.mxu0 0.0
        %641 = vmatpush1.msra.mxu0 0.0
        %642 = vmatprep.subr.mxu0 0.0
        %643 = vmatpush1.msra.mxu0 0.0
        %644 = vmatprep.subr.mxu0 0.0
        %645 = vmatpush1.msra.mxu0 0.0
        %646 = vmatprep.subr.mxu0 0.0
        %647 = vmatpush1.msra.mxu0 0.0
        %648 = vmatprep.subr.mxu0 0.0
        %649 = vmatpush1.msra.mxu0 0.0
        %650 = vmatprep.mubr.f32.mxu0 0.0
        %651 = vmatmul.mubr.f32.gmra.mrb[0].mxu0 %v575
        %v652 = vpop.f32.mrb[0].mxu0
        %v653 = vadd.f32 %v520, %v652
        %v654 = vpop.f32.mrb[0].mxu0
        %655 = vmatprep.mubr.f32.mxu0 0.0
        %656 = vmatmul.mubr.f32.gmra.mrb[0].mxu0 %v578
        %v657 = vpop.f32.mrb[0].mxu0
        %v658 = vadd.f32 %v525, %v657
        %v659 = vpop.f32.mrb[0].mxu0
        %660 = vmatprep.mubr.f32.mxu0 0.0
        %661 = vmatmul.mubr.f32.gmra.mrb[0].mxu0 %v581
        %v662 = vpop.f32.mrb[0].mxu0
        %v663 = vadd.f32 %v530, %v662
        %v664 = vpop.f32.mrb[0].mxu0
        %665 = vmatprep.mubr.f32.mxu0 0.0
        %666 = vmatmul.mubr.f32.gmra.mrb[0].mxu0 %v584
        %v667 = vpop.f32.mrb[0].mxu0
        %v668 = vadd.f32 %v535, %v667
        %v669 = vpop.f32.mrb[0].mxu0
        %670 = vdwg.mxu0
        %v671 = vmax.f32 %v653, 0.0
        %v672 = vmax.f32 %v658, 0.0
        %v673 = vmax.f32 %v663, 0.0
        %v674 = vmax.f32 %v668, 0.0
        %v675 = vld [vmem:[%s5] sm:$0xff]
        %v676 = vld [vmem:[%s5 + $0x8] sm:$0xff]
        %v677 = vld [vmem:[%s5 + $0x10] sm:$0xff]
        %v678 = vld [vmem:[%s5 + $0x18] sm:$0xff]
        %v679 = vld [vmem:[%s6] sm:$0xff]
        %v680 = vld [vmem:[%s6 + $0x8] sm:$0xff]
        %v681 = vld [vmem:[%s6 + $0x10] sm:$0xff]
        %v682 = vld [vmem:[%s6 + $0x18] sm:$0xff]
        %684 = vset.pattern.permute.xlu0 0
        %685 = vperm.xlu0 %684, %v679
        %v686 = vpop.permute.xlu0 %685
        %689 = vset.pattern.permute.xlu0 0
        %690 = vperm.xlu0 %689, %v680
        %v691 = vpop.permute.xlu0 %690
        %694 = vset.pattern.permute.xlu0 0
        %695 = vperm.xlu0 %694, %v681
        %v696 = vpop.permute.xlu0 %695
        %699 = vset.pattern.permute.xlu0 0
        %700 = vperm.xlu0 %699, %v682
        %v701 = vpop.permute.xlu0 %700
        %v704 = vsel %vm331, %v675, 0
        %v707 = vsel %vm331, %v676, 0
        %v710 = vsel %vm331, %v677, 0
        %v713 = vsel %vm331, %v678, 0
        %715 = vmatprep.subr.mxu0 0.0
        %716 = vmatpush1.msra.mxu0 %v671
        %717 = vmatprep.subr.mxu0 0.0
        %718 = vmatpush1.msra.mxu0 %v672
        %719 = vmatprep.subr.mxu0 0.0
        %720 = vmatpush1.msra.mxu0 %v673
        %721 = vmatprep.subr.mxu0 0.0
        %722 = vmatpush1.msra.mxu0 %v674
        %723 = vmatprep.subr.mxu0 0.0
        %724 = vmatpush1.msra.mxu0 0.0
        %725 = vmatprep.subr.mxu0 0.0
        %726 = vmatpush1.msra.mxu0 0.0
        %727 = vmatprep.subr.mxu0 0.0
        %728 = vmatpush1.msra.mxu0 0.0
        %729 = vmatprep.subr.mxu0 0.0
        %730 = vmatpush1.msra.mxu0 0.0
        %731 = vmatprep.subr.mxu0 0.0
        %732 = vmatpush1.msra.mxu0 0.0
        %733 = vmatprep.subr.mxu0 0.0
        %734 = vmatpush1.msra.mxu0 0.0
        %735 = vmatprep.subr.mxu0 0.0
        %736 = vmatpush1.msra.mxu0 0.0
        %737 = vmatprep.subr.mxu0 0.0
        %738 = vmatpush1.msra.mxu0 0.0
        %739 = vmatprep.subr.mxu0 0.0
        %740 = vmatpush1.msra.mxu0 0.0
        %741 = vmatprep.subr.mxu0 0.0
        %742 = vmatpush1.msra.mxu0 0.0
        %743 = vmatprep.subr.mxu0 0.0
        %744 = vmatpush1.msra.mxu0 0.0
        %745 = vmatprep.subr.mxu0 0.0
        %746 = vmatpush1.msra.mxu0 0.0
        %747 = vmatprep.subr.mxu0 0.0
        %748 = vmatpush1.msra.mxu0 0.0
        %749 = vmatprep.subr.mxu0 0.0
        %750 = vmatpush1.msra.mxu0 0.0
        %751 = vmatprep.subr.mxu0 0.0
        %752 = vmatpush1.msra.mxu0 0.0
        %753 = vmatprep.subr.mxu0 0.0
        %754 = vmatpush1.msra.mxu0 0.0
        %755 = vmatprep.subr.mxu0 0.0
        %756 = vmatpush1.msra.mxu0 0.0
        %757 = vmatprep.subr.mxu0 0.0
        %758 = vmatpush1.msra.mxu0 0.0
        %759 = vmatprep.subr.mxu0 0.0
        %760 = vmatpush1.msra.mxu0 0.0
        %761 = vmatprep.subr.mxu0 0.0
        %762 = vmatpush1.msra.mxu0 0.0
        %763 = vmatprep.subr.mxu0 0.0
        %764 = vmatpush1.msra.mxu0 0.0
        %765 = vmatprep.subr.mxu0 0.0
        %766 = vmatpush1.msra.mxu0 0.0
        %767 = vmatprep.subr.mxu0 0.0
        %768 = vmatpush1.msra.mxu0 0.0
        %769 = vmatprep.subr.mxu0 0.0
        %770 = vmatpush1.msra.mxu0 0.0
        %771 = vmatprep.subr.mxu0 0.0
        %772 = vmatpush1.msra.mxu0 0.0
        %773 = vmatprep.subr.mxu0 0.0
        %774 = vmatpush1.msra.mxu0 0.0
        %775 = vmatprep.subr.mxu0 0.0
        %776 = vmatpush1.msra.mxu0 0.0
        %777 = vmatprep.subr.mxu0 0.0
        %778 = vmatpush1.msra.mxu0 0.0
        %779 = vmatprep.mubr.f32.mxu0 0.0
        %780 = vmatmul.mubr.f32.gmra.mrb[0].mxu0 %v704
        %v781 = vpop.f32.mrb[0].mxu0
        %v782 = vadd.f32 %v686, %v781
        %v783 = vpop.f32.mrb[0].mxu0
        %784 = vmatprep.mubr.f32.mxu0 0.0
        %785 = vmatmul.mubr.f32.gmra.mrb[0].mxu0 %v707
        %v786 = vpop.f32.mrb[0].mxu0
        %v787 = vadd.f32 %v691, %v786
        %v788 = vpop.f32.mrb[0].mxu0
        %789 = vmatprep.mubr.f32.mxu0 0.0
        %790 = vmatmul.mubr.f32.gmra.mrb[0].mxu0 %v710
        %v791 = vpop.f32.mrb[0].mxu0
        %v792 = vadd.f32 %v696, %v791
        %v793 = vpop.f32.mrb[0].mxu0
        %794 = vmatprep.mubr.f32.mxu0 0.0
        %795 = vmatmul.mubr.f32.gmra.mrb[0].mxu0 %v713
        %v796 = vpop.f32.mrb[0].mxu0
        %v797 = vadd.f32 %v701, %v796
        %v798 = vpop.f32.mrb[0].mxu0
        %799 = vdwg.mxu0
        %v800 = vadd.f32 %v446, %v782
        %v801 = vadd.f32 %v451, %v787
        %v802 = vadd.f32 %v456, %v792
        %v803 = vadd.f32 %v461, %v797
        %808 = vrot.lane.b32.xlu0 %v800, 8
        %v809 = vpop.permute.xlu0 %808
        %810 = vrot.lane.b32.xlu0 %v801, 8
        %v811 = vpop.permute.xlu0 %810
        %812 = vrot.lane.b32.xlu0 %v802, 8
        %v813 = vpop.permute.xlu0 %812
        %814 = vrot.lane.b32.xlu0 %v803, 8
        %v815 = vpop.permute.xlu0 %814
        %820 = vst.msk [vmem:[#allocation2] sm:$0xff] %vm480, %v809
        %821 = vst.msk [vmem:[#allocation2 + $0x8] sm:$0xff] %vm480, %v811
        %822 = vst.msk [vmem:[#allocation2 + $0x10] sm:$0xff] %vm480, %v813
        %823 = vst.msk [vmem:[#allocation2 + $0x18] sm:$0xff] %vm480, %v815
        %v824 = vld [vmem:[#allocation2] sm:$0xff]
        %v825 = vld [vmem:[#allocation2 + $0x8] sm:$0xff]
        %v826 = vld [vmem:[#allocation2 + $0x10] sm:$0xff]
        %v827 = vld [vmem:[#allocation2 + $0x18] sm:$0xff]
        %828 = vrot.lane.b32.xlu0 %v800, 6
        %v829 = vpop.permute.xlu0 %828
        %830 = vrot.lane.b32.xlu0 %v801, 6
        %v831 = vpop.permute.xlu0 %830
        %832 = vrot.lane.b32.xlu0 %v802, 6
        %v833 = vpop.permute.xlu0 %832
        %834 = vrot.lane.b32.xlu0 %v803, 6
        %v835 = vpop.permute.xlu0 %834
        %840 = vrot.lane.b32.xlu0 %v824, 124
        %v841 = vpop.permute.xlu0 %840
        %842 = vrot.lane.b32.xlu0 %v825, 124
        %v843 = vpop.permute.xlu0 %842
        %844 = vrot.lane.b32.xlu0 %v826, 124
        %v845 = vpop.permute.xlu0 %844
        %846 = vrot.lane.b32.xlu0 %v827, 124
        %v847 = vpop.permute.xlu0 %846
        %s848 = scalar_lea.vmem %s3, 32
        %v849 = vld [vmem:[%s848] sm:$0xff]
        %v850 = vld [vmem:[%s848 + $0x8] sm:$0xff]
        %v851 = vld [vmem:[%s848 + $0x10] sm:$0xff]
        %v852 = vld [vmem:[%s848 + $0x18] sm:$0xff]
        %s853 = scalar_lea.vmem %s4, 32
        %v854 = vld [vmem:[%s853] sm:$0xff]
        %v855 = vld [vmem:[%s853 + $0x8] sm:$0xff]
        %v856 = vld [vmem:[%s853 + $0x10] sm:$0xff]
        %v857 = vld [vmem:[%s853 + $0x18] sm:$0xff]
        %859 = vset.pattern.permute.xlu0 0
        %860 = vperm.xlu0 %859, %v854
        %v861 = vpop.permute.xlu0 %860
        %864 = vset.pattern.permute.xlu0 0
        %865 = vperm.xlu0 %864, %v855
        %v866 = vpop.permute.xlu0 %865
        %869 = vset.pattern.permute.xlu0 0
        %870 = vperm.xlu0 %869, %v856
        %v871 = vpop.permute.xlu0 %870
        %874 = vset.pattern.permute.xlu0 0
        %875 = vperm.xlu0 %874, %v857
        %v876 = vpop.permute.xlu0 %875
        %878 = vrot.lane.b32.xlu0 %v824, 122
        %v879 = vpop.permute.xlu0 %878
        %880 = vrot.lane.b32.xlu0 %v825, 122
        %v881 = vpop.permute.xlu0 %880
        %882 = vrot.lane.b32.xlu0 %v826, 122
        %v883 = vpop.permute.xlu0 %882
        %884 = vrot.lane.b32.xlu0 %v827, 122
        %v885 = vpop.permute.xlu0 %884
        %886 = vrot.lane.b32.xlu0 %v829, 122
        %v887 = vpop.permute.xlu0 %886
        %888 = vrot.lane.b32.xlu0 %v831, 122
        %v889 = vpop.permute.xlu0 %888
        %890 = vrot.lane.b32.xlu0 %v833, 122
        %v891 = vpop.permute.xlu0 %890
        %892 = vrot.lane.b32.xlu0 %v835, 122
        %v893 = vpop.permute.xlu0 %892
        %894 = vrot.lane.b32.xlu0 %v841, 122
        %v895 = vpop.permute.xlu0 %894
        %896 = vrot.lane.b32.xlu0 %v843, 122
        %v897 = vpop.permute.xlu0 %896
        %898 = vrot.lane.b32.xlu0 %v845, 122
        %v899 = vpop.permute.xlu0 %898
        %900 = vrot.lane.b32.xlu0 %v847, 122
        %v901 = vpop.permute.xlu0 %900
        %v915 = vsel %vm573, %v849, 0
        %v918 = vsel %vm573, %v850, 0
        %v921 = vsel %vm573, %v851, 0
        %v924 = vsel %vm573, %v852, 0
        %926 = vmatprep.subr.mxu0 0.0
        %927 = vmatpush1.msra.mxu0 %v879
        %928 = vmatprep.subr.mxu0 0.0
        %929 = vmatpush1.msra.mxu0 %v881
        %930 = vmatprep.subr.mxu0 0.0
        %931 = vmatpush1.msra.mxu0 %v883
        %932 = vmatprep.subr.mxu0 0.0
        %933 = vmatpush1.msra.mxu0 %v885
        %934 = vmatprep.subr.mxu0 0.0
        %935 = vmatpush1.msra.mxu0 %v887
        %936 = vmatprep.subr.mxu0 0.0
        %937 = vmatpush1.msra.mxu0 %v889
        %938 = vmatprep.subr.mxu0 0.0
        %939 = vmatpush1.msra.mxu0 %v891
        %940 = vmatprep.subr.mxu0 0.0
        %941 = vmatpush1.msra.mxu0 %v893
        %942 = vmatprep.subr.mxu0 0.0
        %943 = vmatpush1.msra.mxu0 %v895
        %944 = vmatprep.subr.mxu0 0.0
        %945 = vmatpush1.msra.mxu0 %v897
        %946 = vmatprep.subr.mxu0 0.0
        %947 = vmatpush1.msra.mxu0 %v899
        %948 = vmatprep.subr.mxu0 0.0
        %949 = vmatpush1.msra.mxu0 %v901
        %950 = vmatprep.subr.mxu0 0.0
        %951 = vmatpush1.msra.mxu0 0.0
        %952 = vmatprep.subr.mxu0 0.0
        %953 = vmatpush1.msra.mxu0 0.0
        %954 = vmatprep.subr.mxu0 0.0
        %955 = vmatpush1.msra.mxu0 0.0
        %956 = vmatprep.subr.mxu0 0.0
        %957 = vmatpush1.msra.mxu0 0.0
        %958 = vmatprep.subr.mxu0 0.0
        %959 = vmatpush1.msra.mxu0 0.0
        %960 = vmatprep.subr.mxu0 0.0
        %961 = vmatpush1.msra.mxu0 0.0
        %962 = vmatprep.subr.mxu0 0.0
        %963 = vmatpush1.msra.mxu0 0.0
        %964 = vmatprep.subr.mxu0 0.0
        %965 = vmatpush1.msra.mxu0 0.0
        %966 = vmatprep.subr.mxu0 0.0
        %967 = vmatpush1.msra.mxu0 0.0
        %968 = vmatprep.subr.mxu0 0.0
        %969 = vmatpush1.msra.mxu0 0.0
        %970 = vmatprep.subr.mxu0 0.0
        %971 = vmatpush1.msra.mxu0 0.0
        %972 = vmatprep.subr.mxu0 0.0
        %973 = vmatpush1.msra.mxu0 0.0
        %974 = vmatprep.subr.mxu0 0.0
        %975 = vmatpush1.msra.mxu0 0.0
        %976 = vmatprep.subr.mxu0 0.0
        %977 = vmatpush1.msra.mxu0 0.0
        %978 = vmatprep.subr.mxu0 0.0
        %979 = vmatpush1.msra.mxu0 0.0
        %980 = vmatprep.subr.mxu0 0.0
        %981 = vmatpush1.msra.mxu0 0.0
        %982 = vmatprep.subr.mxu0 0.0
        %983 = vmatpush1.msra.mxu0 0.0
        %984 = vmatprep.subr.mxu0 0.0
        %985 = vmatpush1.msra.mxu0 0.0
        %986 = vmatprep.subr.mxu0 0.0
        %987 = vmatpush1.msra.mxu0 0.0
        %988 = vmatprep.subr.mxu0 0.0
        %989 = vmatpush1.msra.mxu0 0.0
        %990 = vmatprep.mubr.f32.mxu0 0.0
        %991 = vmatmul.mubr.f32.gmra.mrb[0].mxu0 %v915
        %v992 = vpop.f32.mrb[0].mxu0
        %v993 = vadd.f32 %v861, %v992
        %v994 = vpop.f32.mrb[0].mxu0
        %995 = vmatprep.mubr.f32.mxu0 0.0
        %996 = vmatmul.mubr.f32.gmra.mrb[0].mxu0 %v918
        %v997 = vpop.f32.mrb[0].mxu0
        %v998 = vadd.f32 %v866, %v997
        %v999 = vpop.f32.mrb[0].mxu0
        %1000 = vmatprep.mubr.f32.mxu0 0.0
        %1001 = vmatmul.mubr.f32.gmra.mrb[0].mxu0 %v921
        %v1002 = vpop.f32.mrb[0].mxu0
        %v1003 = vadd.f32 %v871, %v1002
        %v1004 = vpop.f32.mrb[0].mxu0
        %1005 = vmatprep.mubr.f32.mxu0 0.0
        %1006 = vmatmul.mubr.f32.gmra.mrb[0].mxu0 %v924
        %v1007 = vpop.f32.mrb[0].mxu0
        %v1008 = vadd.f32 %v876, %v1007
        %v1009 = vpop.f32.mrb[0].mxu0
        %1010 = vdwg.mxu0
        %v1011 = vmax.f32 %v993, 0.0
        %v1012 = vmax.f32 %v998, 0.0
        %v1013 = vmax.f32 %v1003, 0.0
        %v1014 = vmax.f32 %v1008, 0.0
        %s1015 = scalar_lea.vmem %s5, 32
        %v1016 = vld [vmem:[%s1015] sm:$0xff]
        %v1017 = vld [vmem:[%s1015 + $0x8] sm:$0xff]
        %v1018 = vld [vmem:[%s1015 + $0x10] sm:$0xff]
        %v1019 = vld [vmem:[%s1015 + $0x18] sm:$0xff]
        %s1020 = scalar_lea.vmem %s6, 32
        %v1021 = vld [vmem:[%s1020] sm:$0xff]
        %v1022 = vld [vmem:[%s1020 + $0x8] sm:$0xff]
        %v1023 = vld [vmem:[%s1020 + $0x10] sm:$0xff]
        %v1024 = vld [vmem:[%s1020 + $0x18] sm:$0xff]
        %1026 = vset.pattern.permute.xlu0 0
        %1027 = vperm.xlu0 %1026, %v1021
        %v1028 = vpop.permute.xlu0 %1027
        %1031 = vset.pattern.permute.xlu0 0
        %1032 = vperm.xlu0 %1031, %v1022
        %v1033 = vpop.permute.xlu0 %1032
        %1036 = vset.pattern.permute.xlu0 0
        %1037 = vperm.xlu0 %1036, %v1023
        %v1038 = vpop.permute.xlu0 %1037
        %1041 = vset.pattern.permute.xlu0 0
        %1042 = vperm.xlu0 %1041, %v1024
        %v1043 = vpop.permute.xlu0 %1042
        %v1046 = vsel %vm331, %v1016, 0
        %v1049 = vsel %vm331, %v1017, 0
        %v1052 = vsel %vm331, %v1018, 0
        %v1055 = vsel %vm331, %v1019, 0
        %1057 = vmatprep.subr.mxu0 0.0
        %1058 = vmatpush1.msra.mxu0 %v1011
        %1059 = vmatprep.subr.mxu0 0.0
        %1060 = vmatpush1.msra.mxu0 %v1012
        %1061 = vmatprep.subr.mxu0 0.0
        %1062 = vmatpush1.msra.mxu0 %v1013
        %1063 = vmatprep.subr.mxu0 0.0
        %1064 = vmatpush1.msra.mxu0 %v1014
        %1065 = vmatprep.subr.mxu0 0.0
        %1066 = vmatpush1.msra.mxu0 0.0
        %1067 = vmatprep.subr.mxu0 0.0
        %1068 = vmatpush1.msra.mxu0 0.0
        %1069 = vmatprep.subr.mxu0 0.0
        %1070 = vmatpush1.msra.mxu0 0.0
        %1071 = vmatprep.subr.mxu0 0.0
        %1072 = vmatpush1.msra.mxu0 0.0
        %1073 = vmatprep.subr.mxu0 0.0
        %1074 = vmatpush1.msra.mxu0 0.0
        %1075 = vmatprep.subr.mxu0 0.0
        %1076 = vmatpush1.msra.mxu0 0.0
        %1077 = vmatprep.subr.mxu0 0.0
        %1078 = vmatpush1.msra.mxu0 0.0
        %1079 = vmatprep.subr.mxu0 0.0
        %1080 = vmatpush1.msra.mxu0 0.0
        %1081 = vmatprep.subr.mxu0 0.0
        %1082 = vmatpush1.msra.mxu0 0.0
        %1083 = vmatprep.subr.mxu0 0.0
        %1084 = vmatpush1.msra.mxu0 0.0
        %1085 = vmatprep.subr.mxu0 0.0
        %1086 = vmatpush1.msra.mxu0 0.0
        %1087 = vmatprep.subr.mxu0 0.0
        %1088 = vmatpush1.msra.mxu0 0.0
        %1089 = vmatprep.subr.mxu0 0.0
        %1090 = vmatpush1.msra.mxu0 0.0
        %1091 = vmatprep.subr.mxu0 0.0
        %1092 = vmatpush1.msra.mxu0 0.0
        %1093 = vmatprep.subr.mxu0 0.0
        %1094 = vmatpush1.msra.mxu0 0.0
        %1095 = vmatprep.subr.mxu0 0.0
        %1096 = vmatpush1.msra.mxu0 0.0
        %1097 = vmatprep.subr.mxu0 0.0
        %1098 = vmatpush1.msra.mxu0 0.0
        %1099 = vmatprep.subr.mxu0 0.0
        %1100 = vmatpush1.msra.mxu0 0.0
        %1101 = vmatprep.subr.mxu0 0.0
        %1102 = vmatpush1.msra.mxu0 0.0
        %1103 = vmatprep.subr.mxu0 0.0
        %1104 = vmatpush1.msra.mxu0 0.0
        %1105 = vmatprep.subr.mxu0 0.0
        %1106 = vmatpush1.msra.mxu0 0.0
        %1107 = vmatprep.subr.mxu0 0.0
        %1108 = vmatpush1.msra.mxu0 0.0
        %1109 = vmatprep.subr.mxu0 0.0
        %1110 = vmatpush1.msra.mxu0 0.0
        %1111 = vmatprep.subr.mxu0 0.0
        %1112 = vmatpush1.msra.mxu0 0.0
        %1113 = vmatprep.subr.mxu0 0.0
        %1114 = vmatpush1.msra.mxu0 0.0
        %1115 = vmatprep.subr.mxu0 0.0
        %1116 = vmatpush1.msra.mxu0 0.0
        %1117 = vmatprep.subr.mxu0 0.0
        %1118 = vmatpush1.msra.mxu0 0.0
        %1119 = vmatprep.subr.mxu0 0.0
        %1120 = vmatpush1.msra.mxu0 0.0
        %1121 = vmatprep.mubr.f32.mxu0 0.0
        %1122 = vmatmul.mubr.f32.gmra.mrb[0].mxu0 %v1046
        %v1123 = vpop.f32.mrb[0].mxu0
        %v1124 = vadd.f32 %v1028, %v1123
        %v1125 = vpop.f32.mrb[0].mxu0
        %1126 = vmatprep.mubr.f32.mxu0 0.0
        %1127 = vmatmul.mubr.f32.gmra.mrb[0].mxu0 %v1049
        %v1128 = vpop.f32.mrb[0].mxu0
        %v1129 = vadd.f32 %v1033, %v1128
        %v1130 = vpop.f32.mrb[0].mxu0
        %1131 = vmatprep.mubr.f32.mxu0 0.0
        %1132 = vmatmul.mubr.f32.gmra.mrb[0].mxu0 %v1052
        %v1133 = vpop.f32.mrb[0].mxu0
        %v1134 = vadd.f32 %v1038, %v1133
        %v1135 = vpop.f32.mrb[0].mxu0
        %1136 = vmatprep.mubr.f32.mxu0 0.0
        %1137 = vmatmul.mubr.f32.gmra.mrb[0].mxu0 %v1055
        %v1138 = vpop.f32.mrb[0].mxu0
        %v1139 = vadd.f32 %v1043, %v1138
        %v1140 = vpop.f32.mrb[0].mxu0
        %1141 = vdwg.mxu0
        %v1142 = vadd.f32 %v800, %v1124
        %v1143 = vadd.f32 %v801, %v1129
        %v1144 = vadd.f32 %v802, %v1134
        %v1145 = vadd.f32 %v803, %v1139
        %1150 = vrot.lane.b32.xlu0 %v1142, 8
        %v1151 = vpop.permute.xlu0 %1150
        %1152 = vrot.lane.b32.xlu0 %v1143, 8
        %v1153 = vpop.permute.xlu0 %1152
        %1154 = vrot.lane.b32.xlu0 %v1144, 8
        %v1155 = vpop.permute.xlu0 %1154
        %1156 = vrot.lane.b32.xlu0 %v1145, 8
        %v1157 = vpop.permute.xlu0 %1156
        %1162 = vst.msk [vmem:[#allocation2] sm:$0xff] %vm480, %v1151
        %1163 = vst.msk [vmem:[#allocation2 + $0x8] sm:$0xff] %vm480, %v1153
        %1164 = vst.msk [vmem:[#allocation2 + $0x10] sm:$0xff] %vm480, %v1155
        %1165 = vst.msk [vmem:[#allocation2 + $0x18] sm:$0xff] %vm480, %v1157
        %v1166 = vld [vmem:[#allocation2] sm:$0xff]
        %v1167 = vld [vmem:[#allocation2 + $0x8] sm:$0xff]
        %v1168 = vld [vmem:[#allocation2 + $0x10] sm:$0xff]
        %v1169 = vld [vmem:[#allocation2 + $0x18] sm:$0xff]
        %1170 = vrot.lane.b32.xlu0 %v1142, 4
        %v1171 = vpop.permute.xlu0 %1170
        %1172 = vrot.lane.b32.xlu0 %v1143, 4
        %v1173 = vpop.permute.xlu0 %1172
        %1174 = vrot.lane.b32.xlu0 %v1144, 4
        %v1175 = vpop.permute.xlu0 %1174
        %1176 = vrot.lane.b32.xlu0 %v1145, 4
        %v1177 = vpop.permute.xlu0 %1176
        %1182 = vrot.lane.b32.xlu0 %v1166, 120
        %v1183 = vpop.permute.xlu0 %1182
        %1184 = vrot.lane.b32.xlu0 %v1167, 120
        %v1185 = vpop.permute.xlu0 %1184
        %1186 = vrot.lane.b32.xlu0 %v1168, 120
        %v1187 = vpop.permute.xlu0 %1186
        %1188 = vrot.lane.b32.xlu0 %v1169, 120
        %v1189 = vpop.permute.xlu0 %1188
        %s1190 = scalar_lea.vmem %s3, 64
        %v1191 = vld [vmem:[%s1190] sm:$0xff]
        %v1192 = vld [vmem:[%s1190 + $0x8] sm:$0xff]
        %v1193 = vld [vmem:[%s1190 + $0x10] sm:$0xff]
        %v1194 = vld [vmem:[%s1190 + $0x18] sm:$0xff]
        %s1195 = scalar_lea.vmem %s4, 64
        %v1196 = vld [vmem:[%s1195] sm:$0xff]
        %v1197 = vld [vmem:[%s1195 + $0x8] sm:$0xff]
        %v1198 = vld [vmem:[%s1195 + $0x10] sm:$0xff]
        %v1199 = vld [vmem:[%s1195 + $0x18] sm:$0xff]
        %1201 = vset.pattern.permute.xlu0 0
        %1202 = vperm.xlu0 %1201, %v1196
        %v1203 = vpop.permute.xlu0 %1202
        %1206 = vset.pattern.permute.xlu0 0
        %1207 = vperm.xlu0 %1206, %v1197
        %v1208 = vpop.permute.xlu0 %1207
        %1211 = vset.pattern.permute.xlu0 0
        %1212 = vperm.xlu0 %1211, %v1198
        %v1213 = vpop.permute.xlu0 %1212
        %1216 = vset.pattern.permute.xlu0 0
        %1217 = vperm.xlu0 %1216, %v1199
        %v1218 = vpop.permute.xlu0 %1217
        %1220 = vrot.lane.b32.xlu0 %v1166, 124
        %v1221 = vpop.permute.xlu0 %1220
        %1222 = vrot.lane.b32.xlu0 %v1167, 124
        %v1223 = vpop.permute.xlu0 %1222
        %1224 = vrot.lane.b32.xlu0 %v1168, 124
        %v1225 = vpop.permute.xlu0 %1224
        %1226 = vrot.lane.b32.xlu0 %v1169, 124
        %v1227 = vpop.permute.xlu0 %1226
        %1228 = vrot.lane.b32.xlu0 %v1171, 124
        %v1229 = vpop.permute.xlu0 %1228
        %1230 = vrot.lane.b32.xlu0 %v1173, 124
        %v1231 = vpop.permute.xlu0 %1230
        %1232 = vrot.lane.b32.xlu0 %v1175, 124
        %v1233 = vpop.permute.xlu0 %1232
        %1234 = vrot.lane.b32.xlu0 %v1177, 124
        %v1235 = vpop.permute.xlu0 %1234
        %1236 = vrot.lane.b32.xlu0 %v1183, 124
        %v1237 = vpop.permute.xlu0 %1236
        %1238 = vrot.lane.b32.xlu0 %v1185, 124
        %v1239 = vpop.permute.xlu0 %1238
        %1240 = vrot.lane.b32.xlu0 %v1187, 124
        %v1241 = vpop.permute.xlu0 %1240
        %1242 = vrot.lane.b32.xlu0 %v1189, 124
        %v1243 = vpop.permute.xlu0 %1242
        %v1257 = vsel %vm573, %v1191, 0
        %v1260 = vsel %vm573, %v1192, 0
        %v1263 = vsel %vm573, %v1193, 0
        %v1266 = vsel %vm573, %v1194, 0
        %1268 = vmatprep.subr.mxu0 0.0
        %1269 = vmatpush1.msra.mxu0 %v1221
        %1270 = vmatprep.subr.mxu0 0.0
        %1271 = vmatpush1.msra.mxu0 %v1223
        %1272 = vmatprep.subr.mxu0 0.0
        %1273 = vmatpush1.msra.mxu0 %v1225
        %1274 = vmatprep.subr.mxu0 0.0
        %1275 = vmatpush1.msra.mxu0 %v1227
        %1276 = vmatprep.subr.mxu0 0.0
        %1277 = vmatpush1.msra.mxu0 %v1229
        %1278 = vmatprep.subr.mxu0 0.0
        %1279 = vmatpush1.msra.mxu0 %v1231
        %1280 = vmatprep.subr.mxu0 0.0
        %1281 = vmatpush1.msra.mxu0 %v1233
        %1282 = vmatprep.subr.mxu0 0.0
        %1283 = vmatpush1.msra.mxu0 %v1235
        %1284 = vmatprep.subr.mxu0 0.0
        %1285 = vmatpush1.msra.mxu0 %v1237
        %1286 = vmatprep.subr.mxu0 0.0
        %1287 = vmatpush1.msra.mxu0 %v1239
        %1288 = vmatprep.subr.mxu0 0.0
        %1289 = vmatpush1.msra.mxu0 %v1241
        %1290 = vmatprep.subr.mxu0 0.0
        %1291 = vmatpush1.msra.mxu0 %v1243
        %1292 = vmatprep.subr.mxu0 0.0
        %1293 = vmatpush1.msra.mxu0 0.0
        %1294 = vmatprep.subr.mxu0 0.0
        %1295 = vmatpush1.msra.mxu0 0.0
        %1296 = vmatprep.subr.mxu0 0.0
        %1297 = vmatpush1.msra.mxu0 0.0
        %1298 = vmatprep.subr.mxu0 0.0
        %1299 = vmatpush1.msra.mxu0 0.0
        %1300 = vmatprep.subr.mxu0 0.0
        %1301 = vmatpush1.msra.mxu0 0.0
        %1302 = vmatprep.subr.mxu0 0.0
        %1303 = vmatpush1.msra.mxu0 0.0
        %1304 = vmatprep.subr.mxu0 0.0
        %1305 = vmatpush1.msra.mxu0 0.0
        %1306 = vmatprep.subr.mxu0 0.0
        %1307 = vmatpush1.msra.mxu0 0.0
        %1308 = vmatprep.subr.mxu0 0.0
        %1309 = vmatpush1.msra.mxu0 0.0
        %1310 = vmatprep.subr.mxu0 0.0
        %1311 = vmatpush1.msra.mxu0 0.0
        %1312 = vmatprep.subr.mxu0 0.0
        %1313 = vmatpush1.msra.mxu0 0.0
        %1314 = vmatprep.subr.mxu0 0.0
        %1315 = vmatpush1.msra.mxu0 0.0
        %1316 = vmatprep.subr.mxu0 0.0
        %1317 = vmatpush1.msra.mxu0 0.0
        %1318 = vmatprep.subr.mxu0 0.0
        %1319 = vmatpush1.msra.mxu0 0.0
        %1320 = vmatprep.subr.mxu0 0.0
        %1321 = vmatpush1.msra.mxu0 0.0
        %1322 = vmatprep.subr.mxu0 0.0
        %1323 = vmatpush1.msra.mxu0 0.0
        %1324 = vmatprep.subr.mxu0 0.0
        %1325 = vmatpush1.msra.mxu0 0.0
        %1326 = vmatprep.subr.mxu0 0.0
        %1327 = vmatpush1.msra.mxu0 0.0
        %1328 = vmatprep.subr.mxu0 0.0
        %1329 = vmatpush1.msra.mxu0 0.0
        %1330 = vmatprep.subr.mxu0 0.0
        %1331 = vmatpush1.msra.mxu0 0.0
        %1332 = vmatprep.mubr.f32.mxu0 0.0
        %1333 = vmatmul.mubr.f32.gmra.mrb[0].mxu0 %v1257
        %v1334 = vpop.f32.mrb[0].mxu0
        %v1335 = vadd.f32 %v1203, %v1334
        %v1336 = vpop.f32.mrb[0].mxu0
        %1337 = vmatprep.mubr.f32.mxu0 0.0
        %1338 = vmatmul.mubr.f32.gmra.mrb[0].mxu0 %v1260
        %v1339 = vpop.f32.mrb[0].mxu0
        %v1340 = vadd.f32 %v1208, %v1339
        %v1341 = vpop.f32.mrb[0].mxu0
        %1342 = vmatprep.mubr.f32.mxu0 0.0
        %1343 = vmatmul.mubr.f32.gmra.mrb[0].mxu0 %v1263
        %v1344 = vpop.f32.mrb[0].mxu0
        %v1345 = vadd.f32 %v1213, %v1344
        %v1346 = vpop.f32.mrb[0].mxu0
        %1347 = vmatprep.mubr.f32.mxu0 0.0
        %1348 = vmatmul.mubr.f32.gmra.mrb[0].mxu0 %v1266
        %v1349 = vpop.f32.mrb[0].mxu0
        %v1350 = vadd.f32 %v1218, %v1349
        %v1351 = vpop.f32.mrb[0].mxu0
        %1352 = vdwg.mxu0
        %v1353 = vmax.f32 %v1335, 0.0
        %v1354 = vmax.f32 %v1340, 0.0
        %v1355 = vmax.f32 %v1345, 0.0
        %v1356 = vmax.f32 %v1350, 0.0
        %s1357 = scalar_lea.vmem %s5, 64
        %v1358 = vld [vmem:[%s1357] sm:$0xff]
        %v1359 = vld [vmem:[%s1357 + $0x8] sm:$0xff]
        %v1360 = vld [vmem:[%s1357 + $0x10] sm:$0xff]
        %v1361 = vld [vmem:[%s1357 + $0x18] sm:$0xff]
        %s1362 = scalar_lea.vmem %s6, 64
        %v1363 = vld [vmem:[%s1362] sm:$0xff]
        %v1364 = vld [vmem:[%s1362 + $0x8] sm:$0xff]
        %v1365 = vld [vmem:[%s1362 + $0x10] sm:$0xff]
        %v1366 = vld [vmem:[%s1362 + $0x18] sm:$0xff]
        %1368 = vset.pattern.permute.xlu0 0
        %1369 = vperm.xlu0 %1368, %v1363
        %v1370 = vpop.permute.xlu0 %1369
        %1373 = vset.pattern.permute.xlu0 0
        %1374 = vperm.xlu0 %1373, %v1364
        %v1375 = vpop.permute.xlu0 %1374
        %1378 = vset.pattern.permute.xlu0 0
        %1379 = vperm.xlu0 %1378, %v1365
        %v1380 = vpop.permute.xlu0 %1379
        %1383 = vset.pattern.permute.xlu0 0
        %1384 = vperm.xlu0 %1383, %v1366
        %v1385 = vpop.permute.xlu0 %1384
        %v1388 = vsel %vm331, %v1358, 0
        %v1391 = vsel %vm331, %v1359, 0
        %v1394 = vsel %vm331, %v1360, 0
        %v1397 = vsel %vm331, %v1361, 0
        %1399 = vmatprep.subr.mxu0 0.0
        %1400 = vmatpush1.msra.mxu0 %v1353
        %1401 = vmatprep.subr.mxu0 0.0
        %1402 = vmatpush1.msra.mxu0 %v1354
        %1403 = vmatprep.subr.mxu0 0.0
        %1404 = vmatpush1.msra.mxu0 %v1355
        %1405 = vmatprep.subr.mxu0 0.0
        %1406 = vmatpush1.msra.mxu0 %v1356
        %1407 = vmatprep.subr.mxu0 0.0
        %1408 = vmatpush1.msra.mxu0 0.0
        %1409 = vmatprep.subr.mxu0 0.0
        %1410 = vmatpush1.msra.mxu0 0.0
        %1411 = vmatprep.subr.mxu0 0.0
        %1412 = vmatpush1.msra.mxu0 0.0
        %1413 = vmatprep.subr.mxu0 0.0
        %1414 = vmatpush1.msra.mxu0 0.0
        %1415 = vmatprep.subr.mxu0 0.0
        %1416 = vmatpush1.msra.mxu0 0.0
        %1417 = vmatprep.subr.mxu0 0.0
        %1418 = vmatpush1.msra.mxu0 0.0
        %1419 = vmatprep.subr.mxu0 0.0
        %1420 = vmatpush1.msra.mxu0 0.0
        %1421 = vmatprep.subr.mxu0 0.0
        %1422 = vmatpush1.msra.mxu0 0.0
        %1423 = vmatprep.subr.mxu0 0.0
        %1424 = vmatpush1.msra.mxu0 0.0
        %1425 = vmatprep.subr.mxu0 0.0
        %1426 = vmatpush1.msra.mxu0 0.0
        %1427 = vmatprep.subr.mxu0 0.0
        %1428 = vmatpush1.msra.mxu0 0.0
        %1429 = vmatprep.subr.mxu0 0.0
        %1430 = vmatpush1.msra.mxu0 0.0
        %1431 = vmatprep.subr.mxu0 0.0
        %1432 = vmatpush1.msra.mxu0 0.0
        %1433 = vmatprep.subr.mxu0 0.0
        %1434 = vmatpush1.msra.mxu0 0.0
        %1435 = vmatprep.subr.mxu0 0.0
        %1436 = vmatpush1.msra.mxu0 0.0
        %1437 = vmatprep.subr.mxu0 0.0
        %1438 = vmatpush1.msra.mxu0 0.0
        %1439 = vmatprep.subr.mxu0 0.0
        %1440 = vmatpush1.msra.mxu0 0.0
        %1441 = vmatprep.subr.mxu0 0.0
        %1442 = vmatpush1.msra.mxu0 0.0
        %1443 = vmatprep.subr.mxu0 0.0
        %1444 = vmatpush1.msra.mxu0 0.0
        %1445 = vmatprep.subr.mxu0 0.0
        %1446 = vmatpush1.msra.mxu0 0.0
        %1447 = vmatprep.subr.mxu0 0.0
        %1448 = vmatpush1.msra.mxu0 0.0
        %1449 = vmatprep.subr.mxu0 0.0
        %1450 = vmatpush1.msra.mxu0 0.0
        %1451 = vmatprep.subr.mxu0 0.0
        %1452 = vmatpush1.msra.mxu0 0.0
        %1453 = vmatprep.subr.mxu0 0.0
        %1454 = vmatpush1.msra.mxu0 0.0
        %1455 = vmatprep.subr.mxu0 0.0
        %1456 = vmatpush1.msra.mxu0 0.0
        %1457 = vmatprep.subr.mxu0 0.0
        %1458 = vmatpush1.msra.mxu0 0.0
        %1459 = vmatprep.subr.mxu0 0.0
        %1460 = vmatpush1.msra.mxu0 0.0
        %1461 = vmatprep.subr.mxu0 0.0
        %1462 = vmatpush1.msra.mxu0 0.0
        %1463 = vmatprep.mubr.f32.mxu0 0.0
        %1464 = vmatmul.mubr.f32.gmra.mrb[0].mxu0 %v1388
        %v1465 = vpop.f32.mrb[0].mxu0
        %v1466 = vadd.f32 %v1370, %v1465
        %v1467 = vpop.f32.mrb[0].mxu0
        %1468 = vmatprep.mubr.f32.mxu0 0.0
        %1469 = vmatmul.mubr.f32.gmra.mrb[0].mxu0 %v1391
        %v1470 = vpop.f32.mrb[0].mxu0
        %v1471 = vadd.f32 %v1375, %v1470
        %v1472 = vpop.f32.mrb[0].mxu0
        %1473 = vmatprep.mubr.f32.mxu0 0.0
        %1474 = vmatmul.mubr.f32.gmra.mrb[0].mxu0 %v1394
        %v1475 = vpop.f32.mrb[0].mxu0
        %v1476 = vadd.f32 %v1380, %v1475
        %v1477 = vpop.f32.mrb[0].mxu0
        %1478 = vmatprep.mubr.f32.mxu0 0.0
        %1479 = vmatmul.mubr.f32.gmra.mrb[0].mxu0 %v1397
        %v1480 = vpop.f32.mrb[0].mxu0
        %v1481 = vadd.f32 %v1385, %v1480
        %v1482 = vpop.f32.mrb[0].mxu0
        %1483 = vdwg.mxu0
        %v1484 = vadd.f32 %v1142, %v1466
        %v1485 = vadd.f32 %v1143, %v1471
        %v1486 = vadd.f32 %v1144, %v1476
        %v1487 = vadd.f32 %v1145, %v1481
        %1492 = vrot.lane.b32.xlu0 %v1484, 8
        %v1493 = vpop.permute.xlu0 %1492
        %1494 = vrot.lane.b32.xlu0 %v1485, 8
        %v1495 = vpop.permute.xlu0 %1494
        %1496 = vrot.lane.b32.xlu0 %v1486, 8
        %v1497 = vpop.permute.xlu0 %1496
        %1498 = vrot.lane.b32.xlu0 %v1487, 8
        %v1499 = vpop.permute.xlu0 %1498
        %1504 = vst.msk [vmem:[#allocation2] sm:$0xff] %vm480, %v1493
        %1505 = vst.msk [vmem:[#allocation2 + $0x8] sm:$0xff] %vm480, %v1495
        %1506 = vst.msk [vmem:[#allocation2 + $0x10] sm:$0xff] %vm480, %v1497
        %1507 = vst.msk [vmem:[#allocation2 + $0x18] sm:$0xff] %vm480, %v1499
        %v1508 = vld [vmem:[#allocation2] sm:$0xff]
        %v1509 = vld [vmem:[#allocation2 + $0x8] sm:$0xff]
        %v1510 = vld [vmem:[#allocation2 + $0x10] sm:$0xff]
        %v1511 = vld [vmem:[#allocation2 + $0x18] sm:$0xff]
        %1516 = vrot.lane.b32.xlu0 %v1508, 112
        %v1517 = vpop.permute.xlu0 %1516
        %1518 = vrot.lane.b32.xlu0 %v1509, 112
        %v1519 = vpop.permute.xlu0 %1518
        %1520 = vrot.lane.b32.xlu0 %v1510, 112
        %v1521 = vpop.permute.xlu0 %1520
        %1522 = vrot.lane.b32.xlu0 %v1511, 112
        %v1523 = vpop.permute.xlu0 %1522
        %s1528 = scalar_lea.vmem %s3, 96
        %v1529 = vld [vmem:[%s1528] sm:$0xff]
        %v1530 = vld [vmem:[%s1528 + $0x8] sm:$0xff]
        %v1531 = vld [vmem:[%s1528 + $0x10] sm:$0xff]
        %v1532 = vld [vmem:[%s1528 + $0x18] sm:$0xff]
        %s1533 = scalar_lea.vmem %s4, 96
        %v1534 = vld [vmem:[%s1533] sm:$0xff]
        %v1535 = vld [vmem:[%s1533 + $0x8] sm:$0xff]
        %v1536 = vld [vmem:[%s1533 + $0x10] sm:$0xff]
        %v1537 = vld [vmem:[%s1533 + $0x18] sm:$0xff]
        %1539 = vset.pattern.permute.xlu0 0
        %1540 = vperm.xlu0 %1539, %v1534
        %v1541 = vpop.permute.xlu0 %1540
        %1544 = vset.pattern.permute.xlu0 0
        %1545 = vperm.xlu0 %1544, %v1535
        %v1546 = vpop.permute.xlu0 %1545
        %1549 = vset.pattern.permute.xlu0 0
        %1550 = vperm.xlu0 %1549, %v1536
        %v1551 = vpop.permute.xlu0 %1550
        %1554 = vset.pattern.permute.xlu0 0
        %1555 = vperm.xlu0 %1554, %v1537
        %v1556 = vpop.permute.xlu0 %1555
        %v1559 = vsel %vm573, %v1529, 0
        %v1562 = vsel %vm573, %v1530, 0
        %v1565 = vsel %vm573, %v1531, 0
        %v1568 = vsel %vm573, %v1532, 0
        %1570 = vmatprep.subr.mxu0 0.0
        %1571 = vmatpush1.msra.mxu0 %v1508
        %1572 = vmatprep.subr.mxu0 0.0
        %1573 = vmatpush1.msra.mxu0 %v1509
        %1574 = vmatprep.subr.mxu0 0.0
        %1575 = vmatpush1.msra.mxu0 %v1510
        %1576 = vmatprep.subr.mxu0 0.0
        %1577 = vmatpush1.msra.mxu0 %v1511
        %1578 = vmatprep.subr.mxu0 0.0
        %1579 = vmatpush1.msra.mxu0 %v1484
        %1580 = vmatprep.subr.mxu0 0.0
        %1581 = vmatpush1.msra.mxu0 %v1485
        %1582 = vmatprep.subr.mxu0 0.0
        %1583 = vmatpush1.msra.mxu0 %v1486
        %1584 = vmatprep.subr.mxu0 0.0
        %1585 = vmatpush1.msra.mxu0 %v1487
        %1586 = vmatprep.subr.mxu0 0.0
        %1587 = vmatpush1.msra.mxu0 %v1517
        %1588 = vmatprep.subr.mxu0 0.0
        %1589 = vmatpush1.msra.mxu0 %v1519
        %1590 = vmatprep.subr.mxu0 0.0
        %1591 = vmatpush1.msra.mxu0 %v1521
        %1592 = vmatprep.subr.mxu0 0.0
        %1593 = vmatpush1.msra.mxu0 %v1523
        %1594 = vmatprep.subr.mxu0 0.0
        %1595 = vmatpush1.msra.mxu0 0.0
        %1596 = vmatprep.subr.mxu0 0.0
        %1597 = vmatpush1.msra.mxu0 0.0
        %1598 = vmatprep.subr.mxu0 0.0
        %1599 = vmatpush1.msra.mxu0 0.0
        %1600 = vmatprep.subr.mxu0 0.0
        %1601 = vmatpush1.msra.mxu0 0.0
        %1602 = vmatprep.subr.mxu0 0.0
        %1603 = vmatpush1.msra.mxu0 0.0
        %1604 = vmatprep.subr.mxu0 0.0
        %1605 = vmatpush1.msra.mxu0 0.0
        %1606 = vmatprep.subr.mxu0 0.0
        %1607 = vmatpush1.msra.mxu0 0.0
        %1608 = vmatprep.subr.mxu0 0.0
        %1609 = vmatpush1.msra.mxu0 0.0
        %1610 = vmatprep.subr.mxu0 0.0
        %1611 = vmatpush1.msra.mxu0 0.0
        %1612 = vmatprep.subr.mxu0 0.0
        %1613 = vmatpush1.msra.mxu0 0.0
        %1614 = vmatprep.subr.mxu0 0.0
        %1615 = vmatpush1.msra.mxu0 0.0
        %1616 = vmatprep.subr.mxu0 0.0
        %1617 = vmatpush1.msra.mxu0 0.0
        %1618 = vmatprep.subr.mxu0 0.0
        %1619 = vmatpush1.msra.mxu0 0.0
        %1620 = vmatprep.subr.mxu0 0.0
        %1621 = vmatpush1.msra.mxu0 0.0
        %1622 = vmatprep.subr.mxu0 0.0
        %1623 = vmatpush1.msra.mxu0 0.0
        %1624 = vmatprep.subr.mxu0 0.0
        %1625 = vmatpush1.msra.mxu0 0.0
        %1626 = vmatprep.subr.mxu0 0.0
        %1627 = vmatpush1.msra.mxu0 0.0
        %1628 = vmatprep.subr.mxu0 0.0
        %1629 = vmatpush1.msra.mxu0 0.0
        %1630 = vmatprep.subr.mxu0 0.0
        %1631 = vmatpush1.msra.mxu0 0.0
        %1632 = vmatprep.subr.mxu0 0.0
        %1633 = vmatpush1.msra.mxu0 0.0
        %1634 = vmatprep.mubr.f32.mxu0 0.0
        %1635 = vmatmul.mubr.f32.gmra.mrb[0].mxu0 %v1559
        %v1636 = vpop.f32.mrb[0].mxu0
        %v1637 = vadd.f32 %v1541, %v1636
        %v1638 = vpop.f32.mrb[0].mxu0
        %1639 = vmatprep.mubr.f32.mxu0 0.0
        %1640 = vmatmul.mubr.f32.gmra.mrb[0].mxu0 %v1562
        %v1641 = vpop.f32.mrb[0].mxu0
        %v1642 = vadd.f32 %v1546, %v1641
        %v1643 = vpop.f32.mrb[0].mxu0
        %1644 = vmatprep.mubr.f32.mxu0 0.0
        %1645 = vmatmul.mubr.f32.gmra.mrb[0].mxu0 %v1565
        %v1646 = vpop.f32.mrb[0].mxu0
        %v1647 = vadd.f32 %v1551, %v1646
        %v1648 = vpop.f32.mrb[0].mxu0
        %1649 = vmatprep.mubr.f32.mxu0 0.0
        %1650 = vmatmul.mubr.f32.gmra.mrb[0].mxu0 %v1568
        %v1651 = vpop.f32.mrb[0].mxu0
        %v1652 = vadd.f32 %v1556, %v1651
        %v1653 = vpop.f32.mrb[0].mxu0
        %1654 = vdwg.mxu0
        %v1655 = vmax.f32 %v1637, 0.0
        %v1656 = vmax.f32 %v1642, 0.0
        %v1657 = vmax.f32 %v1647, 0.0
        %v1658 = vmax.f32 %v1652, 0.0
        %s1659 = scalar_lea.vmem %s5, 96
        %v1660 = vld [vmem:[%s1659] sm:$0xff]
        %v1661 = vld [vmem:[%s1659 + $0x8] sm:$0xff]
        %v1662 = vld [vmem:[%s1659 + $0x10] sm:$0xff]
        %v1663 = vld [vmem:[%s1659 + $0x18] sm:$0xff]
        %s1664 = scalar_lea.vmem %s6, 96
        %v1665 = vld [vmem:[%s1664] sm:$0xff]
        %v1666 = vld [vmem:[%s1664 + $0x8] sm:$0xff]
        %v1667 = vld [vmem:[%s1664 + $0x10] sm:$0xff]
        %v1668 = vld [vmem:[%s1664 + $0x18] sm:$0xff]
        %1670 = vset.pattern.permute.xlu0 0
        %1671 = vperm.xlu0 %1670, %v1665
        %v1672 = vpop.permute.xlu0 %1671
        %1675 = vset.pattern.permute.xlu0 0
        %1676 = vperm.xlu0 %1675, %v1666
        %v1677 = vpop.permute.xlu0 %1676
        %1680 = vset.pattern.permute.xlu0 0
        %1681 = vperm.xlu0 %1680, %v1667
        %v1682 = vpop.permute.xlu0 %1681
        %1685 = vset.pattern.permute.xlu0 0
        %1686 = vperm.xlu0 %1685, %v1668
        %v1687 = vpop.permute.xlu0 %1686
        %v1690 = vsel %vm331, %v1660, 0
        %v1693 = vsel %vm331, %v1661, 0
        %v1696 = vsel %vm331, %v1662, 0
        %v1699 = vsel %vm331, %v1663, 0
        %1701 = vmatprep.subr.mxu0 0.0
        %1702 = vmatpush1.msra.mxu0 %v1655
        %1703 = vmatprep.subr.mxu0 0.0
        %1704 = vmatpush1.msra.mxu0 %v1656
        %1705 = vmatprep.subr.mxu0 0.0
        %1706 = vmatpush1.msra.mxu0 %v1657
        %1707 = vmatprep.subr.mxu0 0.0
        %1708 = vmatpush1.msra.mxu0 %v1658
        %1709 = vmatprep.subr.mxu0 0.0
        %1710 = vmatpush1.msra.mxu0 0.0
        %1711 = vmatprep.subr.mxu0 0.0
        %1712 = vmatpush1.msra.mxu0 0.0
        %1713 = vmatprep.subr.mxu0 0.0
        %1714 = vmatpush1.msra.mxu0 0.0
        %1715 = vmatprep.subr.mxu0 0.0
        %1716 = vmatpush1.msra.mxu0 0.0
        %1717 = vmatprep.subr.mxu0 0.0
        %1718 = vmatpush1.msra.mxu0 0.0
        %1719 = vmatprep.subr.mxu0 0.0
        %1720 = vmatpush1.msra.mxu0 0.0
        %1721 = vmatprep.subr.mxu0 0.0
        %1722 = vmatpush1.msra.mxu0 0.0
        %1723 = vmatprep.subr.mxu0 0.0
        %1724 = vmatpush1.msra.mxu0 0.0
        %1725 = vmatprep.subr.mxu0 0.0
        %1726 = vmatpush1.msra.mxu0 0.0
        %1727 = vmatprep.subr.mxu0 0.0
        %1728 = vmatpush1.msra.mxu0 0.0
        %1729 = vmatprep.subr.mxu0 0.0
        %1730 = vmatpush1.msra.mxu0 0.0
        %1731 = vmatprep.subr.mxu0 0.0
        %1732 = vmatpush1.msra.mxu0 0.0
        %1733 = vmatprep.subr.mxu0 0.0
        %1734 = vmatpush1.msra.mxu0 0.0
        %1735 = vmatprep.subr.mxu0 0.0
        %1736 = vmatpush1.msra.mxu0 0.0
        %1737 = vmatprep.subr.mxu0 0.0
        %1738 = vmatpush1.msra.mxu0 0.0
        %1739 = vmatprep.subr.mxu0 0.0
        %1740 = vmatpush1.msra.mxu0 0.0
        %1741 = vmatprep.subr.mxu0 0.0
        %1742 = vmatpush1.msra.mxu0 0.0
        %1743 = vmatprep.subr.mxu0 0.0
        %1744 = vmatpush1.msra.mxu0 0.0
        %1745 = vmatprep.subr.mxu0 0.0
        %1746 = vmatpush1.msra.mxu0 0.0
        %1747 = vmatprep.subr.mxu0 0.0
        %1748 = vmatpush1.msra.mxu0 0.0
        %1749 = vmatprep.subr.mxu0 0.0
        %1750 = vmatpush1.msra.mxu0 0.0
        %1751 = vmatprep.subr.mxu0 0.0
        %1752 = vmatpush1.msra.mxu0 0.0
        %1753 = vmatprep.subr.mxu0 0.0
        %1754 = vmatpush1.msra.mxu0 0.0
        %1755 = vmatprep.subr.mxu0 0.0
        %1756 = vmatpush1.msra.mxu0 0.0
        %1757 = vmatprep.subr.mxu0 0.0
        %1758 = vmatpush1.msra.mxu0 0.0
        %1759 = vmatprep.subr.mxu0 0.0
        %1760 = vmatpush1.msra.mxu0 0.0
        %1761 = vmatprep.subr.mxu0 0.0
        %1762 = vmatpush1.msra.mxu0 0.0
        %1763 = vmatprep.subr.mxu0 0.0
        %1764 = vmatpush1.msra.mxu0 0.0
        %1765 = vmatprep.mubr.f32.mxu0 0.0
        %1766 = vmatmul.mubr.f32.gmra.mrb[0].mxu0 %v1690
        %v1767 = vpop.f32.mrb[0].mxu0
        %v1768 = vadd.f32 %v1672, %v1767
        %v1769 = vpop.f32.mrb[0].mxu0
        %1770 = vmatprep.mubr.f32.mxu0 0.0
        %1771 = vmatmul.mubr.f32.gmra.mrb[0].mxu0 %v1693
        %v1772 = vpop.f32.mrb[0].mxu0
        %v1773 = vadd.f32 %v1677, %v1772
        %v1774 = vpop.f32.mrb[0].mxu0
        %1775 = vmatprep.mubr.f32.mxu0 0.0
        %1776 = vmatmul.mubr.f32.gmra.mrb[0].mxu0 %v1696
        %v1777 = vpop.f32.mrb[0].mxu0
        %v1778 = vadd.f32 %v1682, %v1777
        %v1779 = vpop.f32.mrb[0].mxu0
        %1780 = vmatprep.mubr.f32.mxu0 0.0
        %1781 = vmatmul.mubr.f32.gmra.mrb[0].mxu0 %v1699
        %v1782 = vpop.f32.mrb[0].mxu0
        %v1783 = vadd.f32 %v1687, %v1782
        %v1784 = vpop.f32.mrb[0].mxu0
        %1785 = vdwg.mxu0
        %v1786 = vadd.f32 %v1484, %v1768
        %v1787 = vadd.f32 %v1485, %v1773
        %v1788 = vadd.f32 %v1486, %v1778
        %v1789 = vadd.f32 %v1487, %v1783
        %1794 = vrot.lane.b32.xlu0 %v1786, 8
        %v1795 = vpop.permute.xlu0 %1794
        %1796 = vrot.lane.b32.xlu0 %v1787, 8
        %v1797 = vpop.permute.xlu0 %1796
        %1798 = vrot.lane.b32.xlu0 %v1788, 8
        %v1799 = vpop.permute.xlu0 %1798
        %1800 = vrot.lane.b32.xlu0 %v1789, 8
        %v1801 = vpop.permute.xlu0 %1800
        %1806 = vst.msk [vmem:[#allocation2] sm:$0xff] %vm480, %v1795
        %1807 = vst.msk [vmem:[#allocation2 + $0x8] sm:$0xff] %vm480, %v1797
        %1808 = vst.msk [vmem:[#allocation2 + $0x10] sm:$0xff] %vm480, %v1799
        %1809 = vst.msk [vmem:[#allocation2 + $0x18] sm:$0xff] %vm480, %v1801
        %v1810 = vld [vmem:[#allocation2] sm:$0xff]
        %v1811 = vld [vmem:[#allocation2 + $0x8] sm:$0xff]
        %v1812 = vld [vmem:[#allocation2 + $0x10] sm:$0xff]
        %v1813 = vld [vmem:[#allocation2 + $0x18] sm:$0xff]
        %1814 = vrot.lane.b32.xlu0 %v1786, 7
        %v1815 = vpop.permute.xlu0 %1814
        %1816 = vrot.lane.b32.xlu0 %v1787, 7
        %v1817 = vpop.permute.xlu0 %1816
        %1818 = vrot.lane.b32.xlu0 %v1788, 7
        %v1819 = vpop.permute.xlu0 %1818
        %1820 = vrot.lane.b32.xlu0 %v1789, 7
        %v1821 = vpop.permute.xlu0 %1820
        %1826 = vrot.lane.b32.xlu0 %v1810, 126
        %v1827 = vpop.permute.xlu0 %1826
        %1828 = vrot.lane.b32.xlu0 %v1811, 126
        %v1829 = vpop.permute.xlu0 %1828
        %1830 = vrot.lane.b32.xlu0 %v1812, 126
        %v1831 = vpop.permute.xlu0 %1830
        %1832 = vrot.lane.b32.xlu0 %v1813, 126
        %v1833 = vpop.permute.xlu0 %1832
        %v1834 = vld [vmem:[%s7] sm:$0xff]
        %v1835 = vld [vmem:[%s8] sm:$0xff]
        %1837 = vset.pattern.permute.xlu0 0
        %1838 = vperm.xlu0 %1837, %v1835
        %v1839 = vpop.permute.xlu0 %1838
        %1841 = vrot.lane.b32.xlu0 %v1810, 121
        %v1842 = vpop.permute.xlu0 %1841
        %1843 = vrot.lane.b32.xlu0 %v1811, 121
        %v1844 = vpop.permute.xlu0 %1843
        %1845 = vrot.lane.b32.xlu0 %v1812, 121
        %v1846 = vpop.permute.xlu0 %1845
        %1847 = vrot.lane.b32.xlu0 %v1813, 121
        %v1848 = vpop.permute.xlu0 %1847
        %1849 = vrot.lane.b32.xlu0 %v1815, 121
        %v1850 = vpop.permute.xlu0 %1849
        %1851 = vrot.lane.b32.xlu0 %v1817, 121
        %v1852 = vpop.permute.xlu0 %1851
        %1853 = vrot.lane.b32.xlu0 %v1819, 121
        %v1854 = vpop.permute.xlu0 %1853
        %1855 = vrot.lane.b32.xlu0 %v1821, 121
        %v1856 = vpop.permute.xlu0 %1855
        %1857 = vrot.lane.b32.xlu0 %v1827, 121
        %v1858 = vpop.permute.xlu0 %1857
        %1859 = vrot.lane.b32.xlu0 %v1829, 121
        %v1860 = vpop.permute.xlu0 %1859
        %1861 = vrot.lane.b32.xlu0 %v1831, 121
        %v1862 = vpop.permute.xlu0 %1861
        %1863 = vrot.lane.b32.xlu0 %v1833, 121
        %v1864 = vpop.permute.xlu0 %1863
        %v1878 = vsel %vm573, %v1834, 0
        %1880 = vmatprep.subr.mxu0 0.0
        %1881 = vmatpush1.msra.mxu0 %v1842
        %1882 = vmatprep.subr.mxu0 0.0
        %1883 = vmatpush1.msra.mxu0 %v1844
        %1884 = vmatprep.subr.mxu0 0.0
        %1885 = vmatpush1.msra.mxu0 %v1846
        %1886 = vmatprep.subr.mxu0 0.0
        %1887 = vmatpush1.msra.mxu0 %v1848
        %1888 = vmatprep.subr.mxu0 0.0
        %1889 = vmatpush1.msra.mxu0 %v1850
        %1890 = vmatprep.subr.mxu0 0.0
        %1891 = vmatpush1.msra.mxu0 %v1852
        %1892 = vmatprep.subr.mxu0 0.0
        %1893 = vmatpush1.msra.mxu0 %v1854
        %1894 = vmatprep.subr.mxu0 0.0
        %1895 = vmatpush1.msra.mxu0 %v1856
        %1896 = vmatprep.subr.mxu0 0.0
        %1897 = vmatpush1.msra.mxu0 %v1858
        %1898 = vmatprep.subr.mxu0 0.0
        %1899 = vmatpush1.msra.mxu0 %v1860
        %1900 = vmatprep.subr.mxu0 0.0
        %1901 = vmatpush1.msra.mxu0 %v1862
        %1902 = vmatprep.subr.mxu0 0.0
        %1903 = vmatpush1.msra.mxu0 %v1864
        %1904 = vmatprep.subr.mxu0 0.0
        %1905 = vmatpush1.msra.mxu0 0.0
        %1906 = vmatprep.subr.mxu0 0.0
        %1907 = vmatpush1.msra.mxu0 0.0
        %1908 = vmatprep.subr.mxu0 0.0
        %1909 = vmatpush1.msra.mxu0 0.0
        %1910 = vmatprep.subr.mxu0 0.0
        %1911 = vmatpush1.msra.mxu0 0.0
        %1912 = vmatprep.subr.mxu0 0.0
        %1913 = vmatpush1.msra.mxu0 0.0
        %1914 = vmatprep.subr.mxu0 0.0
        %1915 = vmatpush1.msra.mxu0 0.0
        %1916 = vmatprep.subr.mxu0 0.0
        %1917 = vmatpush1.msra.mxu0 0.0
        %1918 = vmatprep.subr.mxu0 0.0
        %1919 = vmatpush1.msra.mxu0 0.0
        %1920 = vmatprep.subr.mxu0 0.0
        %1921 = vmatpush1.msra.mxu0 0.0
        %1922 = vmatprep.subr.mxu0 0.0
        %1923 = vmatpush1.msra.mxu0 0.0
        %1924 = vmatprep.subr.mxu0 0.0
        %1925 = vmatpush1.msra.mxu0 0.0
        %1926 = vmatprep.subr.mxu0 0.0
        %1927 = vmatpush1.msra.mxu0 0.0
        %1928 = vmatprep.subr.mxu0 0.0
        %1929 = vmatpush1.msra.mxu0 0.0
        %1930 = vmatprep.subr.mxu0 0.0
        %1931 = vmatpush1.msra.mxu0 0.0
        %1932 = vmatprep.subr.mxu0 0.0
        %1933 = vmatpush1.msra.mxu0 0.0
        %1934 = vmatprep.subr.mxu0 0.0
        %1935 = vmatpush1.msra.mxu0 0.0
        %1936 = vmatprep.subr.mxu0 0.0
        %1937 = vmatpush1.msra.mxu0 0.0
        %1938 = vmatprep.subr.mxu0 0.0
        %1939 = vmatpush1.msra.mxu0 0.0
        %1940 = vmatprep.subr.mxu0 0.0
        %1941 = vmatpush1.msra.mxu0 0.0
        %1942 = vmatprep.subr.mxu0 0.0
        %1943 = vmatpush1.msra.mxu0 0.0
        %1944 = vmatprep.mubr.f32.mxu0 0.0
        %1945 = vmatmul.mubr.f32.gmra.mrb[0].mxu0 %v1878
        %v1946 = vpop.f32.mrb[0].mxu0
        %v1947 = vadd.f32 %v1839, %v1946
        %v1948 = vpop.f32.mrb[0].mxu0
        %1949 = vdwg.mxu0
        %v1950 = vmax.f32 %v1947, 0.0
        %v1951 = vlaneseq
        %v1952 = vshrl.u32 %v1951, 7
        %v1953 = vadd.s32 %v1952, 8
        %v1954 = vlaneseq
        %v1955 = vand.u32 %v1954, 127
        %v1956 = vmul.u32 %v1955, 2
        %vm1957 = vcmp.eq.s32.totalorder %v1952, %v1956
        %vm1958 = vcmp.eq.s32.totalorder %v1953, %v1956
        %v1959 = vsel %vm1957, 1, 0
        %v1960 = vsel %vm1958, 1, 0
        %v1961 = vcvt.s32.f32 %v1959
        %v1962 = vcvt.s32.f32 %v1960
        %v1964 = vsel %vm366, %v1950, 0
        %1966 = vmatprep.subr.mxu0 0.0
        %1967 = vmatpush1.msra.mxu0 %v1961
        %1968 = vmatprep.subr.mxu0 0.0
        %1969 = vmatpush1.msra.mxu0 %v1962
        %1970 = vmatprep.subr.mxu0 0.0
        %1971 = vmatpush1.msra.mxu0 0.0
        %1972 = vmatprep.subr.mxu0 0.0
        %1973 = vmatpush1.msra.mxu0 0.0
        %1974 = vmatprep.subr.mxu0 0.0
        %1975 = vmatpush1.msra.mxu0 0.0
        %1976 = vmatprep.subr.mxu0 0.0
        %1977 = vmatpush1.msra.mxu0 0.0
        %1978 = vmatprep.subr.mxu0 0.0
        %1979 = vmatpush1.msra.mxu0 0.0
        %1980 = vmatprep.subr.mxu0 0.0
        %1981 = vmatpush1.msra.mxu0 0.0
        %1982 = vmatprep.subr.mxu0 0.0
        %1983 = vmatpush1.msra.mxu0 0.0
        %1984 = vmatprep.subr.mxu0 0.0
        %1985 = vmatpush1.msra.mxu0 0.0
        %1986 = vmatprep.subr.mxu0 0.0
        %1987 = vmatpush1.msra.mxu0 0.0
        %1988 = vmatprep.subr.mxu0 0.0
        %1989 = vmatpush1.msra.mxu0 0.0
        %1990 = vmatprep.subr.mxu0 0.0
        %1991 = vmatpush1.msra.mxu0 0.0
        %1992 = vmatprep.subr.mxu0 0.0
        %1993 = vmatpush1.msra.mxu0 0.0
        %1994 = vmatprep.subr.mxu0 0.0
        %1995 = vmatpush1.msra.mxu0 0.0
        %1996 = vmatprep.subr.mxu0 0.0
        %1997 = vmatpush1.msra.mxu0 0.0
        %1998 = vmatprep.subr.mxu0 0.0
        %1999 = vmatpush1.msra.mxu0 0.0
        %2000 = vmatprep.subr.mxu0 0.0
        %2001 = vmatpush1.msra.mxu0 0.0
        %2002 = vmatprep.subr.mxu0 0.0
        %2003 = vmatpush1.msra.mxu0 0.0
        %2004 = vmatprep.subr.mxu0 0.0
        %2005 = vmatpush1.msra.mxu0 0.0
        %2006 = vmatprep.subr.mxu0 0.0
        %2007 = vmatpush1.msra.mxu0 0.0
        %2008 = vmatprep.subr.mxu0 0.0
        %2009 = vmatpush1.msra.mxu0 0.0
        %2010 = vmatprep.subr.mxu0 0.0
        %2011 = vmatpush1.msra.mxu0 0.0
        %2012 = vmatprep.subr.mxu0 0.0
        %2013 = vmatpush1.msra.mxu0 0.0
        %2014 = vmatprep.subr.mxu0 0.0
        %2015 = vmatpush1.msra.mxu0 0.0
        %2016 = vmatprep.subr.mxu0 0.0
        %2017 = vmatpush1.msra.mxu0 0.0
        %2018 = vmatprep.subr.mxu0 0.0
        %2019 = vmatpush1.msra.mxu0 0.0
        %2020 = vmatprep.subr.mxu0 0.0
        %2021 = vmatpush1.msra.mxu0 0.0
        %2022 = vmatprep.subr.mxu0 0.0
        %2023 = vmatpush1.msra.mxu0 0.0
        %2024 = vmatprep.subr.mxu0 0.0
        %2025 = vmatpush1.msra.mxu0 0.0
        %2026 = vmatprep.subr.mxu0 0.0
        %2027 = vmatpush1.msra.mxu0 0.0
        %2028 = vmatprep.subr.mxu0 0.0
        %2029 = vmatpush1.msra.mxu0 0.0
        %2030 = vmatprep.mubr.f32.mxu0 0.0
        %2031 = vmatmul.mubr.f32.gmra.mrb[0].mxu0 %v1964
        %v2032 = vpop.f32.mrb[0].mxu0
        %v2033 = vadd.f32 0.0, %v2032
        %v2034 = vpop.f32.mrb[0].mxu0
        %2035 = vdwg.mxu0
        %vm2036 = vcmask 64512
        %2037 = vst.msk [vmem:[%s325] sm:$0xff] %vm2036, %v2033
        %s2038 = sand.u32 %s225, 1
        %s2039 = scalar_lea.sflag [#allocation4], %s2038
        %s2040 = sand.u32 %s225, 1
        %s2041 = smul.addr %s2040, 8
        %s2042 = scalar_lea.vmem [#allocation3], %s2041
        // Predicated region
        $region57: #{single_stage_forward.1} parent=55 // pred_check
          %p2043 = pneg %p235
        $region58: #{single_stage_forward.1} parent=55 // pred_check_branch
          %2045 = sbr.rel (%p2043) target = $region60
        $region59: #{single_stage_forward.1} parent=55 // pred_region
          %s2047 = ssub.s32 128, 128
          %2048 = vsyncadd %s2039, %s2047
          %s2049 = smul.addr %s23, 128
          %s2050 = scalar_lea.hbm %s9, %s2049
          %s2052 = sshll.u32 %s2042, 4
          %s2053 = int_to_ptr.vmem [resolvable:$true] %s2052
          %2055 = dma.vmem_to_hbm [thread:$0]  %s2053, 128, %s2050, %s2039
        $region60: #{single_stage_forward.1} parent=55 // pred_fallthru
          _
      $region56: #{single_stage_forward.1} parent=5 // pred_fallthru
        _
      %p2056 = scmp.le.s32.totalorder 2, %s18
      // Predicated region
      $region61: #{single_stage_forward.1} parent=5 // pred_check
        %p2057 = pneg %p2056
      $region62: #{single_stage_forward.1} parent=5 // pred_check_branch
        %2059 = sbr.rel (%p2057) target = $region64
      $region63: #{single_stage_forward.1} parent=5 // pred_region
        %s2060 = ssub.s32 %s18, 2
        // Predicated region
        $region65: #{single_stage_forward.1} parent=63 // pred_check
          %p2061 = pneg %p241
        $region66: #{single_stage_forward.1} parent=63 // pred_check_branch
          %2063 = sbr.rel (%p2061) target = $region68
        $region67: #{single_stage_forward.1} parent=63 // pred_region
          %s2064 = sand.u32 %s226, 1
          %s2065 = scalar_lea.sflag [#allocation4], %s2064
          %s2066 = sand.u32 %s226, 1
          %s2067 = smul.addr %s2066, 8
          %s2068 = scalar_lea.vmem [#allocation3], %s2067
          %2069 = dma.done %s2065, 128
        $region68: #{single_stage_forward.1} parent=63 // pred_fallthru
          _
      $region64: #{single_stage_forward.1} parent=5 // pred_fallthru
        _
    $region6: #{single_stage_forward.1} parent=1 // loop_footer
      %s22 = sadd.s32 1, %s18
    $region7: #{single_stage_forward.1} parent=1 // loop_footer_branch
      %17 = sbr.rel target = $region3
    $region8: #{single_stage_forward.1} parent=1 // loop_exit
      _
    %2070 = vsyncpa [#allocation4], 1
    %s2071 = scalar_lea.sflag [#allocation4], 1
    %2072 = vsyncpa %s2071, 1

</llo_original>
